<compile_context>
chip_gen: v7x
topology: tpu7x:2x2x1
jax: 0.10.0
libtpu: 0.0.40
codegen_flags: <defaults>
</compile_context>

<pallas_src>
import functools

import jax
import jax.numpy as jnp
from jax.experimental import pallas as pl
from jax.experimental.pallas import tpu as pltpu


def _round_up(x, m):
    return ((x + m - 1) // m) * m


def _layer_norm(x, g, b, eps=1e-5):
    mu = jnp.mean(x, axis=-1, keepdims=True)
    var = jnp.mean(jnp.square(x - mu), axis=-1, keepdims=True)
    return (x - mu) * jax.lax.rsqrt(var + eps) * g + b


def _encoder_kernel(x_ref, bias_ref, ln1g_ref, ln1b_ref, wqkv_ref, wo_ref,
                    bo_ref, ln2g_ref, ln2b_ref, w1_ref, b1_ref, w2_ref,
                    b2_ref, o_ref, acc_ref, qkv_ref, attn_ref,
                    *, heads, dim_head, batch_tile):
    layer = pl.program_id(1)
    rows = acc_ref.shape[0]                  # rows = batch_tile * padded_seq
    sp = rows // batch_tile                  # padded sequence length
    hd = heads * dim_head

    # Load the (bf16) activation tile into the f32 residual accumulator once.
    @pl.when(layer == 0)
    def _():
        acc_ref[...] = x_ref[...].astype(jnp.float32)

    x = acc_ref[...]                         # (rows, D) f32 residual stream

    # ---------------- attention block (pre-LN), fused QKV ----------------
    xn = _layer_norm(x, ln1g_ref[0, 0], ln1b_ref[0, 0])
    qkv_ref[...] = jnp.dot(xn.astype(wqkv_ref.dtype), wqkv_ref[0],
                           preferred_element_type=jnp.float32
                           ).astype(qkv_ref.dtype)          # (rows, 3*Hd) bf16

    # Key-padding bias: built once in the wrapper, resident in VMEM.
    key_bias = bias_ref[...].reshape(1, 1, sp)               # (1, 1, sp_k)
    scale = dim_head ** -0.5

    # Short static unroll over heads; each head's output is staged straight
    # into the bf16 VMEM buffer so its temporaries die immediately.
    for h in range(heads):
        lo = h * dim_head
        qh = qkv_ref[:, lo:lo + dim_head].reshape(batch_tile, sp, dim_head)
        kh = qkv_ref[:, hd + lo:hd + lo + dim_head].reshape(
            batch_tile, sp, dim_head)
        vh = qkv_ref[:, 2 * hd + lo:2 * hd + lo + dim_head].reshape(
            batch_tile, sp, dim_head)

        sc = jnp.einsum('bqd,bkd->bqk', qh, kh,
                        preferred_element_type=jnp.float32) * scale + key_bias
        sc = sc - jnp.max(sc, axis=-1, keepdims=True)
        p = jnp.exp(sc)
        p = p * pl.reciprocal(jnp.sum(p, axis=-1, keepdims=True), approx=True)
        oh = jnp.einsum('bqk,bkd->bqd', p.astype(vh.dtype), vh,
                        preferred_element_type=jnp.float32)  # (bt, sp, dh)
        attn_ref[:, lo:lo + dim_head] = oh.reshape(rows, dim_head).astype(
            attn_ref.dtype)

    # Single full-K out-projection: (rows, Hd) x (Hd, D).
    x = x + jnp.dot(attn_ref[...], wo_ref[0],
                    preferred_element_type=jnp.float32) + bo_ref[0, 0]

    # ---------------- feed-forward block (pre-LN) ----------------
    xn2 = _layer_norm(x, ln2g_ref[0, 0], ln2b_ref[0, 0])
    h1 = jnp.dot(xn2.astype(w1_ref.dtype), w1_ref[0],
                 preferred_element_type=jnp.float32) + b1_ref[0, 0]
    # TODO(synk): switch to exact-erf GELU if the reference uses nn.GELU() default.
    h1 = jax.nn.gelu(h1, approximate=True)
    x = x + jnp.dot(h1.astype(w2_ref.dtype), w2_ref[0],
                    preferred_element_type=jnp.float32) + b2_ref[0, 0]

    acc_ref[...] = x

    # Write the tile back to HBM only once, after the final layer.
    @pl.when(layer == pl.num_programs(1) - 1)
    def _():
        o_ref[...] = x.astype(o_ref.dtype)


def _vmem_limit_bytes():
    cap = 128 * 1024 * 1024
    try:
        info = pltpu.get_tpu_info()
        cap = int(getattr(info, "vmem_capacity_bytes", cap))
    except Exception:
        pass
    # ~80% of physical VMEM, capped at 100 MiB:
    #   v5e/v6e (128 MiB) -> 100 MiB, v7x (64 MiB) -> ~51 MiB.
    return min(int(cap * 0.8), 100 * 1024 * 1024)


def _pick_batch_tile(B, S_pad, D, Hd, Fh, heads, vmem_limit):
    """Largest divisor of B whose activation footprint fits the VMEM budget."""
    # Double-buffered per-layer bf16 weights + f32 norm/bias vectors.
    w_bytes = 2 * 2 * (D * 3 * Hd + Hd * D + 2 * D * Fh) + 2 * 4 * (6 * D + Fh)
    budget = max(vmem_limit - w_bytes - (8 << 20), 4 << 20)

    def act_bytes(bt):
        rows = bt * S_pad
        fixed = (2 * rows * D * 2       # bf16 input block (double-buffered)
                 + 2 * rows * D * 2     # bf16 output block (double-buffered)
                 + rows * D * 4         # f32 residual scratch
                 + rows * 3 * Hd * 2    # bf16 qkv scratch
                 + rows * Hd * 2)       # bf16 attn staging scratch
        temps = rows * (2 * D + Fh) * 4 + 3 * bt * S_pad * S_pad * 4
        return fixed + temps

    divisors = [d for d in range(1, B + 1) if B % d == 0]
    fitting = [d for d in divisors if act_bytes(d) <= budget] or [1]
    bt = max(fitting)
    # Prefer >= 2 batch tiles (v7x megacore) when per-tile rows stay large.
    if bt == B and B > 1:
        smaller = [d for d in fitting if d < B and d * S_pad >= 256]
        if smaller:
            bt = max(smaller)
    return bt


def _transformer(x, params, *, heads, dim_head, seq_real):
    """x: (B, S_pad, D) padded activations. Runs all layers in one pallas_call."""
    B, S_pad, D = x.shape
    depth = params["w_qkv"].shape[0]
    Hd = heads * dim_head
    Fh = params["w1"].shape[-1]

    vmem_limit = _vmem_limit_bytes()
    batch_tile = _pick_batch_tile(B, S_pad, D, Hd, Fh, heads, vmem_limit)
    num_bt = B // batch_tile
    rows = batch_tile * S_pad

    x2 = x.reshape(B * S_pad, D).astype(jnp.bfloat16)   # bf16 HBM activation I/O
    key_bias = jnp.where(jnp.arange(S_pad) < seq_real, 0.0,
                         -1e30).astype(jnp.float32)[None, :]

    kernel = functools.partial(_encoder_kernel, heads=heads, dim_head=dim_head,
                               batch_tile=batch_tile)

    # Advisory cost hint for the XLA scheduler.
    T = B * S_pad
    flops = depth * (2 * T * D * 3 * Hd + 4 * T * S_pad * Hd
                     + 2 * T * Hd * D + 4 * T * D * Fh)
    transcendentals = depth * T * (S_pad * heads + Fh)
    w_bytes = sum(int(params[k].size) * params[k].dtype.itemsize
                  for k in ("ln1_g", "ln1_b", "w_qkv", "wo", "bo",
                            "ln2_g", "ln2_b", "w1", "b1", "w2", "b2"))
    bytes_accessed = 2 * x2.size * x2.dtype.itemsize + num_bt * w_bytes

    def _wspec(per_layer_shape):
        zeros = (0,) * len(per_layer_shape)
        return pl.BlockSpec((1,) + tuple(per_layer_shape),
                            lambda b, l: (l,) + zeros)

    out2 = pl.pallas_call(
        kernel,
        out_shape=jax.ShapeDtypeStruct((B * S_pad, D), jnp.bfloat16),
        grid_spec=pltpu.PrefetchScalarGridSpec(
            num_scalar_prefetch=0,
            grid=(num_bt, depth),
            in_specs=[
                pl.BlockSpec((rows, D), lambda b, l: (b, 0)),    # activations
                pl.BlockSpec((1, S_pad), lambda b, l: (0, 0)),   # key-pad bias
                _wspec((1, D)), _wspec((1, D)),                  # ln1 gamma/beta
                _wspec((D, 3 * Hd)),                             # fused W_qkv
                _wspec((Hd, D)),                                 # W_o (full K)
                _wspec((1, D)),                                  # b_o
                _wspec((1, D)), _wspec((1, D)),                  # ln2 gamma/beta
                _wspec((D, Fh)), _wspec((1, Fh)),                # W_1, b_1
                _wspec((Fh, D)), _wspec((1, D)),                 # W_2, b_2
            ],
            out_specs=pl.BlockSpec((rows, D), lambda b, l: (b, 0)),
            scratch_shapes=[pltpu.VMEM((rows, D), jnp.float32),      # residual
                            pltpu.VMEM((rows, 3 * Hd), jnp.bfloat16),  # qkv
                            pltpu.VMEM((rows, Hd), jnp.bfloat16)],     # attn out
        ),
        compiler_params=pltpu.CompilerParams(
            dimension_semantics=("parallel", "arbitrary"),
            vmem_limit_bytes=int(vmem_limit)),
        input_output_aliases={0: 0},
        cost_estimate=pl.CostEstimate(flops=int(flops),
                                      transcendentals=int(transcendentals),
                                      bytes_accessed=int(bytes_accessed)),
    )(x2, key_bias, params["ln1_g"], params["ln1_b"], params["w_qkv"],
      params["wo"], params["bo"], params["ln2_g"], params["ln2_b"],
      params["w1"], params["b1"], params["w2"], params["b2"])

    return out2.reshape(B, S_pad, D).astype(jnp.float32)


def init_params(key, dim, depth, dim_head, heads):
    Hd = heads * dim_head
    Fh = 4 * dim

    def w(k, shape):  # matmul weights stored bf16 (MXU-native, half the DMA)
        return (0.02 * jax.random.normal(k, shape, jnp.float32)).astype(jnp.bfloat16)

    ks = jax.random.split(jax.random.fold_in(key, 1), 4)
    return {
        "global_token": jax.random.normal(jax.random.fold_in(key, 0),
                                          (dim,), jnp.float32),
        "ln1_g": jnp.ones((depth, 1, dim), jnp.float32),
        "ln1_b": jnp.zeros((depth, 1, dim), jnp.float32),
        "w_qkv": w(ks[0], (depth, dim, 3 * Hd)),      # columns = [q | k | v]
        "wo": w(ks[1], (depth, Hd, dim)),             # full-K out-projection
        "bo": jnp.zeros((depth, 1, dim), jnp.float32),
        "ln2_g": jnp.ones((depth, 1, dim), jnp.float32),
        "ln2_b": jnp.zeros((depth, 1, dim), jnp.float32),
        "w1": w(ks[2], (depth, dim, Fh)),
        "b1": jnp.zeros((depth, 1, Fh), jnp.float32),
        "w2": w(ks[3], (depth, Fh, dim)),
        "b2": jnp.zeros((depth, 1, dim), jnp.float32),
    }


def text_modify_encoder(text_encodings, params, *, heads, dim_head):
    """Forward pass: prepend learned global token, run transformer, unpack."""
    B, N, D = text_encodings.shape
    # project_in is Identity.
    global_tok = jnp.broadcast_to(params["global_token"][None, None, :],
                                  (B, 1, D))
    x = jnp.concatenate([global_tok, text_encodings], axis=1)   # pack 'b * d'
    S = N + 1
    # bf16 sublane alignment (16); lane-dense key axis (128) for long sequences.
    S_pad = _round_up(S, 128) if S >= 96 else _round_up(S, 16)
    if S_pad != S:
        x = jnp.pad(x, ((0, 0), (0, S_pad - S), (0, 0)))
    x = _transformer(x, params, heads=heads, dim_head=dim_head, seq_real=S)
    x = x[:, :S]
    global_tokens = x[:, 0, :]           # unpack: (B, D)
    text_out = x[:, 1:, :]               # unpack: (B, N, D)
    mask = None                          # texts path / masking not exercised
    return global_tokens, text_out, mask


def _reference_forward(text_encodings, params, *, heads, dim_head):
    """Pure-jnp reference mirroring the kernel's bf16 I/O + bf16 matmul casts."""
    B, N, D = text_encodings.shape
    Hd = heads * dim_head
    depth = params["w_qkv"].shape[0]
    g = jnp.broadcast_to(params["global_token"][None, None, :], (B, 1, D))
    x = jnp.concatenate([g, text_encodings], axis=1)
    x = x.astype(jnp.bfloat16).astype(jnp.float32)   # mirror bf16 HBM input
    S = N + 1
    scale = dim_head ** -0.5
    for l in range(depth):
        xn = _layer_norm(x, params["ln1_g"][l, 0], params["ln1_b"][l, 0])
        qkv = jnp.einsum('bsd,df->bsf', xn.astype(jnp.bfloat16),
                         params["w_qkv"][l], preferred_element_type=jnp.float32)
        qkv = qkv.reshape(B, S, 3, heads, dim_head).astype(jnp.bfloat16)
        q, k, v = qkv[:, :, 0], qkv[:, :, 1], qkv[:, :, 2]
        s = jnp.einsum('bqhd,bkhd->bhqk', q, k,
                       preferred_element_type=jnp.float32) * scale
        p = jax.nn.softmax(s, axis=-1)
        o = jnp.einsum('bhqk,bkhd->bqhd', p.astype(jnp.bfloat16), v,
                       preferred_element_type=jnp.float32)
        o = o.reshape(B, S, Hd).astype(jnp.bfloat16)
        x = x + jnp.einsum('bse,ed->bsd', o, params["wo"][l],
                           preferred_element_type=jnp.float32) + params["bo"][l, 0]
        xn2 = _layer_norm(x, params["ln2_g"][l, 0], params["ln2_b"][l, 0])
        h1 = jnp.einsum('bsd,df->bsf', xn2.astype(jnp.bfloat16), params["w1"][l],
                        preferred_element_type=jnp.float32) + params["b1"][l, 0]
        h1 = jax.nn.gelu(h1, approximate=True)
        x = x + jnp.einsum('bsf,fd->bsd', h1.astype(jnp.bfloat16), params["w2"][l],
                           preferred_element_type=jnp.float32) + params["b2"][l, 0]
    x = x.astype(jnp.bfloat16).astype(jnp.float32)   # mirror bf16 HBM output
    return x[:, 0, :], x[:, 1:, :]


if __name__ == "__main__":
    dim, depth, dim_head, heads = 32, 2, 16, 2
    B, N = 2, 8

    key = jax.random.PRNGKey(0)
    params = init_params(key, dim, depth, dim_head, heads)
    text_encodings = jax.random.normal(jax.random.fold_in(key, 999),
                                       (B, N, dim), jnp.float32)

    g, t, mask = text_modify_encoder(text_encodings, params,
                                     heads=heads, dim_head=dim_head)
    jax.block_until_ready((g, t))

    assert g.shape == (B, dim)
    assert t.shape == (B, N, dim)
    assert mask is None
    assert bool(jnp.all(jnp.isfinite(g))) and bool(jnp.all(jnp.isfinite(t)))

    g_ref, t_ref = _reference_forward(text_encodings, params,
                                      heads=heads, dim_head=dim_head)
    assert bool(jnp.allclose(g, g_ref, atol=2e-2, rtol=2e-2)), \
        float(jnp.max(jnp.abs(g - g_ref)))
    assert bool(jnp.allclose(t, t_ref, atol=2e-2, rtol=2e-2)), \
        float(jnp.max(jnp.abs(t - t_ref)))

    print("KERNEL_OK")
</pallas_src>

<mosaic_0001>
module attributes {stable_mosaic.version = 11 : i64} {
  func.func @_encoder_kernel(%arg0: i32, %arg1: i32, %arg2: memref<32x32xbf16, #tpu.memory_space<vmem>>, %arg3: memref<1x16xf32, #tpu.memory_space<vmem>>, %arg4: memref<1x1x32xf32, #tpu.memory_space<vmem>>, %arg5: memref<1x1x32xf32, #tpu.memory_space<vmem>>, %arg6: memref<1x32x96xbf16, #tpu.memory_space<vmem>>, %arg7: memref<1x32x32xbf16, #tpu.memory_space<vmem>>, %arg8: memref<1x1x32xf32, #tpu.memory_space<vmem>>, %arg9: memref<1x1x32xf32, #tpu.memory_space<vmem>>, %arg10: memref<1x1x32xf32, #tpu.memory_space<vmem>>, %arg11: memref<1x32x128xbf16, #tpu.memory_space<vmem>>, %arg12: memref<1x1x128xf32, #tpu.memory_space<vmem>>, %arg13: memref<1x128x32xbf16, #tpu.memory_space<vmem>>, %arg14: memref<1x1x32xf32, #tpu.memory_space<vmem>>, %arg15: memref<32x32xbf16, #tpu.memory_space<vmem>>, %arg16: memref<32x32xf32, #tpu.memory_space<vmem>>, %arg17: memref<32x96xbf16, #tpu.memory_space<vmem>>, %arg18: memref<32x32xbf16, #tpu.memory_space<vmem>>) attributes {dimension_semantics = [#tpu.dimension_semantics<parallel>, #tpu.dimension_semantics<arbitrary>], iteration_bounds = array<i64: 1, 2>, scalar_prefetch = 0 : i64, scratch_operands = 3 : i64, tpu.core_type = #tpu.core_type<tc>, window_params = [{transform_indices = @transform_0, window_bounds = array<i64: 32, 32>}, {pipeline_mode = #tpu.pipeline_mode<synchronous>, transform_indices = @transform_1, window_bounds = array<i64: 1, 16>}, {transform_indices = @transform_2, window_bounds = array<i64: 1, 1, 32>}, {transform_indices = @transform_3, window_bounds = array<i64: 1, 1, 32>}, {transform_indices = @transform_4, window_bounds = array<i64: 1, 32, 96>}, {transform_indices = @transform_5, window_bounds = array<i64: 1, 32, 32>}, {transform_indices = @transform_6, window_bounds = array<i64: 1, 1, 32>}, {transform_indices = @transform_7, window_bounds = array<i64: 1, 1, 32>}, {transform_indices = @transform_8, window_bounds = array<i64: 1, 1, 32>}, {transform_indices = @transform_9, window_bounds = array<i64: 1, 32, 128>}, {transform_indices = @transform_10, window_bounds = array<i64: 1, 1, 128>}, {transform_indices = @transform_11, window_bounds = array<i64: 1, 128, 32>}, {transform_indices = @transform_12, window_bounds = array<i64: 1, 1, 32>}, {transform_indices = @transform_13, window_bounds = array<i64: 32, 32>}]} {
    %c0_i32 = arith.constant 0 : i32
    %0 = arith.cmpi eq, %arg1, %c0_i32 : i32
    %1 = arith.extui %0 : i1 to i32
    %c0_i32_0 = arith.constant 0 : i32
    %2 = arith.cmpi ne, %1, %c0_i32_0 : i32
    scf.if %2 {
      %c0_82 = arith.constant 0 : index
      %c0_83 = arith.constant 0 : index
      %166 = vector.load %arg2[%c0_82, %c0_83] : memref<32x32xbf16, #tpu.memory_space<vmem>>, vector<32x32xbf16>
      %167 = arith.extf %166 : vector<32x32xbf16> to vector<32x32xf32>
      %c0_84 = arith.constant 0 : index
      %c0_85 = arith.constant 0 : index
      %168 = vector.load %arg16[%c0_84, %c0_85] : memref<32x32xf32, #tpu.memory_space<vmem>>, vector<32x32xf32>
      tpu.vector_store %arg16[%c0_84, %c0_85], %167 {strides = array<i32>} : memref<32x32xf32, #tpu.memory_space<vmem>>, vector<32x32xf32>,
    } else {
    }
    %c0 = arith.constant 0 : index
    %c0_1 = arith.constant 0 : index
    %3 = vector.load %arg16[%c0, %c0_1] : memref<32x32xf32, #tpu.memory_space<vmem>>, vector<32x32xf32>
    %c0_2 = arith.constant 0 : index
    %c0_3 = arith.constant 0 : index
    %c0_4 = arith.constant 0 : index
    %4 = vector.load %arg4[%c0_2, %c0_3, %c0_4] : memref<1x1x32xf32, #tpu.memory_space<vmem>>, vector<1x1x32xf32>
    %5 = vector.shape_cast %4 : vector<1x1x32xf32> to vector<32xf32>
    %c0_5 = arith.constant 0 : index
    %c0_6 = arith.constant 0 : index
    %c0_7 = arith.constant 0 : index
    %6 = vector.load %arg5[%c0_5, %c0_6, %c0_7] : memref<1x1x32xf32, #tpu.memory_space<vmem>>, vector<1x1x32xf32>
    %7 = vector.shape_cast %6 : vector<1x1x32xf32> to vector<32xf32>
    %cst = arith.constant dense<0.000000e+00> : vector<32xf32>
    %8 = vector.multi_reduction <add>, %3, %cst [1] : vector<32x32xf32> to vector<32xf32>
    %9 = vector.shape_cast %8 : vector<32xf32> to vector<32x1xf32>
    %cst_8 = arith.constant 3.200000e+01 : f32
    %10 = vector.broadcast %cst_8 : f32 to vector<32x1xf32>
    %11 = arith.divf %9, %10 : vector<32x1xf32>
    %12 = vector.broadcast %11 : vector<32x1xf32> to vector<32x32xf32>
    %13 = arith.subf %3, %12 : vector<32x32xf32>
    %14 = arith.mulf %13, %13 : vector<32x32xf32>
    %cst_9 = arith.constant dense<0.000000e+00> : vector<32xf32>
    %15 = vector.multi_reduction <add>, %14, %cst_9 [1] : vector<32x32xf32> to vector<32xf32>
    %16 = vector.shape_cast %15 : vector<32xf32> to vector<32x1xf32>
    %cst_10 = arith.constant 3.200000e+01 : f32
    %17 = vector.broadcast %cst_10 : f32 to vector<32x1xf32>
    %18 = arith.divf %16, %17 : vector<32x1xf32>
    %19 = vector.broadcast %11 : vector<32x1xf32> to vector<32x32xf32>
    %20 = arith.subf %3, %19 : vector<32x32xf32>
    %cst_11 = arith.constant 9.99999974E-6 : f32
    %21 = vector.broadcast %cst_11 : f32 to vector<32x1xf32>
    %22 = arith.addf %18, %21 : vector<32x1xf32>
    %23 = math.rsqrt %22 : vector<32x1xf32>
    %24 = vector.broadcast %23 : vector<32x1xf32> to vector<32x32xf32>
    %25 = arith.mulf %20, %24 : vector<32x32xf32>
    %26 = vector.shape_cast %5 : vector<32xf32> to vector<1x32xf32>
    %27 = vector.broadcast %26 : vector<1x32xf32> to vector<32x32xf32>
    %28 = arith.mulf %25, %27 : vector<32x32xf32>
    %29 = vector.shape_cast %7 : vector<32xf32> to vector<1x32xf32>
    %30 = vector.broadcast %29 : vector<1x32xf32> to vector<32x32xf32>
    %31 = arith.addf %28, %30 : vector<32x32xf32>
    %32 = arith.truncf %31 : vector<32x32xf32> to vector<32x32xbf16>
    %c0_12 = arith.constant 0 : index
    %c0_13 = arith.constant 0 : index
    %c0_14 = arith.constant 0 : index
    %33 = vector.load %arg6[%c0_12, %c0_13, %c0_14] : memref<1x32x96xbf16, #tpu.memory_space<vmem>>, vector<1x32x96xbf16>
    %34 = vector.shape_cast %33 : vector<1x32x96xbf16> to vector<32x96xbf16>
    %cst_15 = arith.constant dense<0.000000e+00> : vector<32x96xf32>
    %35 = tpu.matmul %32, %34, %cst_15 {dimension_numbers = #tpu.dot_dimension_numbers<[1], [0], [0], [1], [0, 0, 1, 1], [], []>} : vector<32x32xbf16>, vector<32x96xbf16>, vector<32x96xf32> -> vector<32x96xf32>
    %36 = arith.truncf %35 : vector<32x96xf32> to vector<32x96xbf16>
    %c0_16 = arith.constant 0 : index
    %c0_17 = arith.constant 0 : index
    %37 = vector.load %arg17[%c0_16, %c0_17] : memref<32x96xbf16, #tpu.memory_space<vmem>>, vector<32x96xbf16>
    tpu.vector_store %arg17[%c0_16, %c0_17], %36 {strides = array<i32>} : memref<32x96xbf16, #tpu.memory_space<vmem>>, vector<32x96xbf16>,
    %c0_18 = arith.constant 0 : index
    %c0_19 = arith.constant 0 : index
    %38 = vector.load %arg3[%c0_18, %c0_19] : memref<1x16xf32, #tpu.memory_space<vmem>>, vector<1x16xf32>
    %39 = vector.shape_cast %38 : vector<1x16xf32> to vector<1x1x16xf32>
    %c0_20 = arith.constant 0 : index
    %c0_21 = arith.constant 0 : index
    %40 = vector.load %arg17[%c0_20, %c0_21] : memref<32x96xbf16, #tpu.memory_space<vmem>>, vector<32x16xbf16>
    %41 = vector.shape_cast %40 : vector<32x16xbf16> to vector<2x16x16xbf16>
    %c0_22 = arith.constant 0 : index
    %c32 = arith.constant 32 : index
    %42 = vector.load %arg17[%c0_22, %c32] : memref<32x96xbf16, #tpu.memory_space<vmem>>, vector<32x16xbf16>
    %43 = vector.shape_cast %42 : vector<32x16xbf16> to vector<2x16x16xbf16>
    %c0_23 = arith.constant 0 : index
    %c64 = arith.constant 64 : index
    %44 = vector.load %arg17[%c0_23, %c64] : memref<32x96xbf16, #tpu.memory_space<vmem>>, vector<32x16xbf16>
    %45 = vector.shape_cast %44 : vector<32x16xbf16> to vector<2x16x16xbf16>
    "tpu.trace_start"() <{level = 10 : i32, message = "bqd,bkd->bqk"}> : () -> ()
    %cst_24 = arith.constant dense<0.000000e+00> : vector<2x16x16xf32>
    %46 = tpu.matmul %41, %43, %cst_24 {dimension_numbers = #tpu.dot_dimension_numbers<[2], [2], [1], [1], [0, 0, 0, 1, 1, 1], [0], [0]>} : vector<2x16x16xbf16>, vector<2x16x16xbf16>, vector<2x16x16xf32> -> vector<2x16x16xf32>
    "tpu.trace_stop"() : () -> ()
    %cst_25 = arith.constant 2.500000e-01 : f32
    %47 = vector.broadcast %cst_25 : f32 to vector<2x16x16xf32>
    %48 = arith.mulf %46, %47 : vector<2x16x16xf32>
    %49 = vector.broadcast %39 : vector<1x1x16xf32> to vector<2x16x16xf32>
    %50 = arith.addf %48, %49 : vector<2x16x16xf32>
    %cst_26 = arith.constant dense<0xFF800000> : vector<2x16xf32>
    %51 = vector.multi_reduction <maximumf>, %50, %cst_26 [2] : vector<2x16x16xf32> to vector<2x16xf32>
    %52 = vector.shape_cast %51 : vector<2x16xf32> to vector<2x16x1xf32>
    %53 = vector.broadcast %52 : vector<2x16x1xf32> to vector<2x16x16xf32>
    %54 = arith.subf %50, %53 : vector<2x16x16xf32>
    %55 = math.exp %54 : vector<2x16x16xf32>
    %cst_27 = arith.constant dense<0.000000e+00> : vector<2x16xf32>
    %56 = vector.multi_reduction <add>, %55, %cst_27 [2] : vector<2x16x16xf32> to vector<2x16xf32>
    %57 = vector.shape_cast %56 : vector<2x16xf32> to vector<2x16x1xf32>
    %58 = tpu.reciprocal %57 {approx = true} : vector<2x16x1xf32> -> vector<2x16x1xf32>
    %59 = vector.broadcast %58 : vector<2x16x1xf32> to vector<2x16x16xf32>
    %60 = arith.mulf %55, %59 : vector<2x16x16xf32>
    %61 = arith.truncf %60 : vector<2x16x16xf32> to vector<2x16x16xbf16>
    "tpu.trace_start"() <{level = 10 : i32, message = "bqk,bkd->bqd"}> : () -> ()
    %cst_28 = arith.constant dense<0.000000e+00> : vector<2x16x16xf32>
    %62 = tpu.matmul %61, %45, %cst_28 {dimension_numbers = #tpu.dot_dimension_numbers<[2], [1], [1], [2], [0, 0, 0, 1, 1, 2], [0], [0]>} : vector<2x16x16xbf16>, vector<2x16x16xbf16>, vector<2x16x16xf32> -> vector<2x16x16xf32>
    "tpu.trace_stop"() : () -> ()
    %63 = vector.shape_cast %62 : vector<2x16x16xf32> to vector<32x16xf32>
    %64 = arith.truncf %63 : vector<32x16xf32> to vector<32x16xbf16>
    %c0_29 = arith.constant 0 : index
    %c0_30 = arith.constant 0 : index
    %65 = vector.load %arg18[%c0_29, %c0_30] : memref<32x32xbf16, #tpu.memory_space<vmem>>, vector<32x16xbf16>
    tpu.vector_store %arg18[%c0_29, %c0_30], %64 {strides = array<i32>} : memref<32x32xbf16, #tpu.memory_space<vmem>>, vector<32x16xbf16>,
    %c0_31 = arith.constant 0 : index
    %c16 = arith.constant 16 : index
    %66 = vector.load %arg17[%c0_31, %c16] : memref<32x96xbf16, #tpu.memory_space<vmem>>, vector<32x16xbf16>
    %67 = vector.shape_cast %66 : vector<32x16xbf16> to vector<2x16x16xbf16>
    %c0_32 = arith.constant 0 : index
    %c48 = arith.constant 48 : index
    %68 = vector.load %arg17[%c0_32, %c48] : memref<32x96xbf16, #tpu.memory_space<vmem>>, vector<32x16xbf16>
    %69 = vector.shape_cast %68 : vector<32x16xbf16> to vector<2x16x16xbf16>
    %c0_33 = arith.constant 0 : index
    %c80 = arith.constant 80 : index
    %70 = vector.load %arg17[%c0_33, %c80] : memref<32x96xbf16, #tpu.memory_space<vmem>>, vector<32x16xbf16>
    %71 = vector.shape_cast %70 : vector<32x16xbf16> to vector<2x16x16xbf16>
    "tpu.trace_start"() <{level = 10 : i32, message = "bqd,bkd->bqk"}> : () -> ()
    %cst_34 = arith.constant dense<0.000000e+00> : vector<2x16x16xf32>
    %72 = tpu.matmul %67, %69, %cst_34 {dimension_numbers = #tpu.dot_dimension_numbers<[2], [2], [1], [1], [0, 0, 0, 1, 1, 1], [0], [0]>} : vector<2x16x16xbf16>, vector<2x16x16xbf16>, vector<2x16x16xf32> -> vector<2x16x16xf32>
    "tpu.trace_stop"() : () -> ()
    %cst_35 = arith.constant 2.500000e-01 : f32
    %73 = vector.broadcast %cst_35 : f32 to vector<2x16x16xf32>
    %74 = arith.mulf %72, %73 : vector<2x16x16xf32>
    %75 = vector.broadcast %39 : vector<1x1x16xf32> to vector<2x16x16xf32>
    %76 = arith.addf %74, %75 : vector<2x16x16xf32>
    %cst_36 = arith.constant dense<0xFF800000> : vector<2x16xf32>
    %77 = vector.multi_reduction <maximumf>, %76, %cst_36 [2] : vector<2x16x16xf32> to vector<2x16xf32>
    %78 = vector.shape_cast %77 : vector<2x16xf32> to vector<2x16x1xf32>
    %79 = vector.broadcast %78 : vector<2x16x1xf32> to vector<2x16x16xf32>
    %80 = arith.subf %76, %79 : vector<2x16x16xf32>
    %81 = math.exp %80 : vector<2x16x16xf32>
    %cst_37 = arith.constant dense<0.000000e+00> : vector<2x16xf32>
    %82 = vector.multi_reduction <add>, %81, %cst_37 [2] : vector<2x16x16xf32> to vector<2x16xf32>
    %83 = vector.shape_cast %82 : vector<2x16xf32> to vector<2x16x1xf32>
    %84 = tpu.reciprocal %83 {approx = true} : vector<2x16x1xf32> -> vector<2x16x1xf32>
    %85 = vector.broadcast %84 : vector<2x16x1xf32> to vector<2x16x16xf32>
    %86 = arith.mulf %81, %85 : vector<2x16x16xf32>
    %87 = arith.truncf %86 : vector<2x16x16xf32> to vector<2x16x16xbf16>
    "tpu.trace_start"() <{level = 10 : i32, message = "bqk,bkd->bqd"}> : () -> ()
    %cst_38 = arith.constant dense<0.000000e+00> : vector<2x16x16xf32>
    %88 = tpu.matmul %87, %71, %cst_38 {dimension_numbers = #tpu.dot_dimension_numbers<[2], [1], [1], [2], [0, 0, 0, 1, 1, 2], [0], [0]>} : vector<2x16x16xbf16>, vector<2x16x16xbf16>, vector<2x16x16xf32> -> vector<2x16x16xf32>
    "tpu.trace_stop"() : () -> ()
    %89 = vector.shape_cast %88 : vector<2x16x16xf32> to vector<32x16xf32>
    %90 = arith.truncf %89 : vector<32x16xf32> to vector<32x16xbf16>
    %c0_39 = arith.constant 0 : index
    %c16_40 = arith.constant 16 : index
    %91 = vector.load %arg18[%c0_39, %c16_40] : memref<32x32xbf16, #tpu.memory_space<vmem>>, vector<32x16xbf16>
    tpu.vector_store %arg18[%c0_39, %c16_40], %90 {strides = array<i32>} : memref<32x32xbf16, #tpu.memory_space<vmem>>, vector<32x16xbf16>,
    %c0_41 = arith.constant 0 : index
    %c0_42 = arith.constant 0 : index
    %92 = vector.load %arg18[%c0_41, %c0_42] : memref<32x32xbf16, #tpu.memory_space<vmem>>, vector<32x32xbf16>
    %c0_43 = arith.constant 0 : index
    %c0_44 = arith.constant 0 : index
    %c0_45 = arith.constant 0 : index
    %93 = vector.load %arg7[%c0_43, %c0_44, %c0_45] : memref<1x32x32xbf16, #tpu.memory_space<vmem>>, vector<1x32x32xbf16>
    %94 = vector.shape_cast %93 : vector<1x32x32xbf16> to vector<32x32xbf16>
    %cst_46 = arith.constant dense<0.000000e+00> : vector<32x32xf32>
    %95 = tpu.matmul %92, %94, %cst_46 {dimension_numbers = #tpu.dot_dimension_numbers<[1], [0], [0], [1], [0, 0, 1, 1], [], []>} : vector<32x32xbf16>, vector<32x32xbf16>, vector<32x32xf32> -> vector<32x32xf32>
    %96 = arith.addf %3, %95 : vector<32x32xf32>
    %c0_47 = arith.constant 0 : index
    %c0_48 = arith.constant 0 : index
    %c0_49 = arith.constant 0 : index
    %97 = vector.load %arg8[%c0_47, %c0_48, %c0_49] : memref<1x1x32xf32, #tpu.memory_space<vmem>>, vector<1x1x32xf32>
    %98 = vector.shape_cast %97 : vector<1x1x32xf32> to vector<32xf32>
    %99 = vector.shape_cast %98 : vector<32xf32> to vector<1x32xf32>
    %100 = vector.broadcast %99 : vector<1x32xf32> to vector<32x32xf32>
    %101 = arith.addf %96, %100 : vector<32x32xf32>
    %c0_50 = arith.constant 0 : index
    %c0_51 = arith.constant 0 : index
    %c0_52 = arith.constant 0 : index
    %102 = vector.load %arg9[%c0_50, %c0_51, %c0_52] : memref<1x1x32xf32, #tpu.memory_space<vmem>>, vector<1x1x32xf32>
    %103 = vector.shape_cast %102 : vector<1x1x32xf32> to vector<32xf32>
    %c0_53 = arith.constant 0 : index
    %c0_54 = arith.constant 0 : index
    %c0_55 = arith.constant 0 : index
    %104 = vector.load %arg10[%c0_53, %c0_54, %c0_55] : memref<1x1x32xf32, #tpu.memory_space<vmem>>, vector<1x1x32xf32>
    %105 = vector.shape_cast %104 : vector<1x1x32xf32> to vector<32xf32>
    %cst_56 = arith.constant dense<0.000000e+00> : vector<32xf32>
    %106 = vector.multi_reduction <add>, %101, %cst_56 [1] : vector<32x32xf32> to vector<32xf32>
    %107 = vector.shape_cast %106 : vector<32xf32> to vector<32x1xf32>
    %cst_57 = arith.constant 3.200000e+01 : f32
    %108 = vector.broadcast %cst_57 : f32 to vector<32x1xf32>
    %109 = arith.divf %107, %108 : vector<32x1xf32>
    %110 = vector.broadcast %109 : vector<32x1xf32> to vector<32x32xf32>
    %111 = arith.subf %101, %110 : vector<32x32xf32>
    %112 = arith.mulf %111, %111 : vector<32x32xf32>
    %cst_58 = arith.constant dense<0.000000e+00> : vector<32xf32>
    %113 = vector.multi_reduction <add>, %112, %cst_58 [1] : vector<32x32xf32> to vector<32xf32>
    %114 = vector.shape_cast %113 : vector<32xf32> to vector<32x1xf32>
    %cst_59 = arith.constant 3.200000e+01 : f32
    %115 = vector.broadcast %cst_59 : f32 to vector<32x1xf32>
    %116 = arith.divf %114, %115 : vector<32x1xf32>
    %117 = vector.broadcast %109 : vector<32x1xf32> to vector<32x32xf32>
    %118 = arith.subf %101, %117 : vector<32x32xf32>
    %cst_60 = arith.constant 9.99999974E-6 : f32
    %119 = vector.broadcast %cst_60 : f32 to vector<32x1xf32>
    %120 = arith.addf %116, %119 : vector<32x1xf32>
    %121 = math.rsqrt %120 : vector<32x1xf32>
    %122 = vector.broadcast %121 : vector<32x1xf32> to vector<32x32xf32>
    %123 = arith.mulf %118, %122 : vector<32x32xf32>
    %124 = vector.shape_cast %103 : vector<32xf32> to vector<1x32xf32>
    %125 = vector.broadcast %124 : vector<1x32xf32> to vector<32x32xf32>
    %126 = arith.mulf %123, %125 : vector<32x32xf32>
    %127 = vector.shape_cast %105 : vector<32xf32> to vector<1x32xf32>
    %128 = vector.broadcast %127 : vector<1x32xf32> to vector<32x32xf32>
    %129 = arith.addf %126, %128 : vector<32x32xf32>
    %130 = arith.truncf %129 : vector<32x32xf32> to vector<32x32xbf16>
    %c0_61 = arith.constant 0 : index
    %c0_62 = arith.constant 0 : index
    %c0_63 = arith.constant 0 : index
    %131 = vector.load %arg11[%c0_61, %c0_62, %c0_63] : memref<1x32x128xbf16, #tpu.memory_space<vmem>>, vector<1x32x128xbf16>
    %132 = vector.shape_cast %131 : vector<1x32x128xbf16> to vector<32x128xbf16>
    %cst_64 = arith.constant dense<0.000000e+00> : vector<32x128xf32>
    %133 = tpu.matmul %130, %132, %cst_64 {dimension_numbers = #tpu.dot_dimension_numbers<[1], [0], [0], [1], [0, 0, 1, 1], [], []>} : vector<32x32xbf16>, vector<32x128xbf16>, vector<32x128xf32> -> vector<32x128xf32>
    %c0_65 = arith.constant 0 : index
    %c0_66 = arith.constant 0 : index
    %c0_67 = arith.constant 0 : index
    %134 = vector.load %arg12[%c0_65, %c0_66, %c0_67] : memref<1x1x128xf32, #tpu.memory_space<vmem>>, vector<1x1x128xf32>
    %135 = vector.shape_cast %134 : vector<1x1x128xf32> to vector<128xf32>
    %136 = vector.shape_cast %135 : vector<128xf32> to vector<1x128xf32>
    %137 = vector.broadcast %136 : vector<1x128xf32> to vector<32x128xf32>
    %138 = arith.addf %133, %137 : vector<32x128xf32>
    %139 = arith.mulf %138, %138 : vector<32x128xf32>
    %140 = arith.mulf %138, %139 : vector<32x128xf32>
    %cst_68 = arith.constant 4.471500e-02 : f32
    %141 = vector.broadcast %cst_68 : f32 to vector<32x128xf32>
    %142 = arith.mulf %141, %140 : vector<32x128xf32>
    %143 = arith.addf %138, %142 : vector<32x128xf32>
    %cst_69 = arith.constant 0.797884583 : f32
    %144 = vector.broadcast %cst_69 : f32 to vector<32x128xf32>
    %145 = arith.mulf %144, %143 : vector<32x128xf32>
    %146 = math.tanh %145 : vector<32x128xf32>
    %cst_70 = arith.constant 1.000000e+00 : f32
    %147 = vector.broadcast %cst_70 : f32 to vector<32x128xf32>
    %148 = arith.addf %147, %146 : vector<32x128xf32>
    %cst_71 = arith.constant 5.000000e-01 : f32
    %149 = vector.broadcast %cst_71 : f32 to vector<32x128xf32>
    %150 = arith.mulf %149, %148 : vector<32x128xf32>
    %151 = arith.mulf %138, %150 : vector<32x128xf32>
    %152 = arith.truncf %151 : vector<32x128xf32> to vector<32x128xbf16>
    %c0_72 = arith.constant 0 : index
    %c0_73 = arith.constant 0 : index
    %c0_74 = arith.constant 0 : index
    %153 = vector.load %arg13[%c0_72, %c0_73, %c0_74] : memref<1x128x32xbf16, #tpu.memory_space<vmem>>, vector<1x128x32xbf16>
    %154 = vector.shape_cast %153 : vector<1x128x32xbf16> to vector<128x32xbf16>
    %cst_75 = arith.constant dense<0.000000e+00> : vector<32x32xf32>
    %155 = tpu.matmul %152, %154, %cst_75 {dimension_numbers = #tpu.dot_dimension_numbers<[1], [0], [0], [1], [0, 0, 1, 1], [], []>} : vector<32x128xbf16>, vector<128x32xbf16>, vector<32x32xf32> -> vector<32x32xf32>
    %156 = arith.addf %101, %155 : vector<32x32xf32>
    %c0_76 = arith.constant 0 : index
    %c0_77 = arith.constant 0 : index
    %c0_78 = arith.constant 0 : index
    %157 = vector.load %arg14[%c0_76, %c0_77, %c0_78] : memref<1x1x32xf32, #tpu.memory_space<vmem>>, vector<1x1x32xf32>
    %158 = vector.shape_cast %157 : vector<1x1x32xf32> to vector<32xf32>
    %159 = vector.shape_cast %158 : vector<32xf32> to vector<1x32xf32>
    %160 = vector.broadcast %159 : vector<1x32xf32> to vector<32x32xf32>
    %161 = arith.addf %156, %160 : vector<32x32xf32>
    %c0_79 = arith.constant 0 : index
    %c0_80 = arith.constant 0 : index
    %162 = vector.load %arg16[%c0_79, %c0_80] : memref<32x32xf32, #tpu.memory_space<vmem>>, vector<32x32xf32>
    tpu.vector_store %arg16[%c0_79, %c0_80], %161 {strides = array<i32>} : memref<32x32xf32, #tpu.memory_space<vmem>>, vector<32x32xf32>,
    %c1_i32 = arith.constant 1 : i32
    %163 = arith.cmpi eq, %arg1, %c1_i32 : i32
    %164 = arith.extui %163 : i1 to i32
    %c0_i32_81 = arith.constant 0 : i32
    %165 = arith.cmpi ne, %164, %c0_i32_81 : i32
    scf.if %165 {
      %166 = arith.truncf %161 : vector<32x32xf32> to vector<32x32xbf16>
      %c0_82 = arith.constant 0 : index
      %c0_83 = arith.constant 0 : index
      %167 = vector.load %arg15[%c0_82, %c0_83] : memref<32x32xbf16, #tpu.memory_space<vmem>>, vector<32x32xbf16>
      tpu.vector_store %arg15[%c0_82, %c0_83], %166 {strides = array<i32>} : memref<32x32xbf16, #tpu.memory_space<vmem>>, vector<32x32xbf16>,
    } else {
    }
    return
  }
  func.func @transform_0(%arg0: i32, %arg1: i32) -> (i32, i32) {
    %c0_i32 = arith.constant 0 : i32
    %c0_i32_0 = arith.constant 0 : i32
    return %arg0, %c0_i32 : i32, i32
  }
  func.func @transform_1(%arg0: i32, %arg1: i32) -> (i32, i32) {
    %c0_i32 = arith.constant 0 : i32
    %c0_i32_0 = arith.constant 0 : i32
    %c0_i32_1 = arith.constant 0 : i32
    return %c0_i32, %c0_i32_0 : i32, i32
  }
  func.func @transform_2(%arg0: i32, %arg1: i32) -> (i32, i32, i32) {
    %c0_i32 = arith.constant 0 : i32
    %c0_i32_0 = arith.constant 0 : i32
    %c0_i32_1 = arith.constant 0 : i32
    return %arg1, %c0_i32, %c0_i32_0 : i32, i32, i32
  }
  func.func @transform_3(%arg0: i32, %arg1: i32) -> (i32, i32, i32) {
    %c0_i32 = arith.constant 0 : i32
    %c0_i32_0 = arith.constant 0 : i32
    %c0_i32_1 = arith.constant 0 : i32
    return %arg1, %c0_i32, %c0_i32_0 : i32, i32, i32
  }
  func.func @transform_4(%arg0: i32, %arg1: i32) -> (i32, i32, i32) {
    %c0_i32 = arith.constant 0 : i32
    %c0_i32_0 = arith.constant 0 : i32
    %c0_i32_1 = arith.constant 0 : i32
    return %arg1, %c0_i32, %c0_i32_0 : i32, i32, i32
  }
  func.func @transform_5(%arg0: i32, %arg1: i32) -> (i32, i32, i32) {
    %c0_i32 = arith.constant 0 : i32
    %c0_i32_0 = arith.constant 0 : i32
    %c0_i32_1 = arith.constant 0 : i32
    return %arg1, %c0_i32, %c0_i32_0 : i32, i32, i32
  }
  func.func @transform_6(%arg0: i32, %arg1: i32) -> (i32, i32, i32) {
    %c0_i32 = arith.constant 0 : i32
    %c0_i32_0 = arith.constant 0 : i32
    %c0_i32_1 = arith.constant 0 : i32
    return %arg1, %c0_i32, %c0_i32_0 : i32, i32, i32
  }
  func.func @transform_7(%arg0: i32, %arg1: i32) -> (i32, i32, i32) {
    %c0_i32 = arith.constant 0 : i32
    %c0_i32_0 = arith.constant 0 : i32
    %c0_i32_1 = arith.constant 0 : i32
    return %arg1, %c0_i32, %c0_i32_0 : i32, i32, i32
  }
  func.func @transform_8(%arg0: i32, %arg1: i32) -> (i32, i32, i32) {
    %c0_i32 = arith.constant 0 : i32
    %c0_i32_0 = arith.constant 0 : i32
    %c0_i32_1 = arith.constant 0 : i32
    return %arg1, %c0_i32, %c0_i32_0 : i32, i32, i32
  }
  func.func @transform_9(%arg0: i32, %arg1: i32) -> (i32, i32, i32) {
    %c0_i32 = arith.constant 0 : i32
    %c0_i32_0 = arith.constant 0 : i32
    %c0_i32_1 = arith.constant 0 : i32
    return %arg1, %c0_i32, %c0_i32_0 : i32, i32, i32
  }
  func.func @transform_10(%arg0: i32, %arg1: i32) -> (i32, i32, i32) {
    %c0_i32 = arith.constant 0 : i32
    %c0_i32_0 = arith.constant 0 : i32
    %c0_i32_1 = arith.constant 0 : i32
    return %arg1, %c0_i32, %c0_i32_0 : i32, i32, i32
  }
  func.func @transform_11(%arg0: i32, %arg1: i32) -> (i32, i32, i32) {
    %c0_i32 = arith.constant 0 : i32
    %c0_i32_0 = arith.constant 0 : i32
    %c0_i32_1 = arith.constant 0 : i32
    return %arg1, %c0_i32, %c0_i32_0 : i32, i32, i32
  }
  func.func @transform_12(%arg0: i32, %arg1: i32) -> (i32, i32, i32) {
    %c0_i32 = arith.constant 0 : i32
    %c0_i32_0 = arith.constant 0 : i32
    %c0_i32_1 = arith.constant 0 : i32
    return %arg1, %c0_i32, %c0_i32_0 : i32, i32, i32
  }
  func.func @transform_13(%arg0: i32, %arg1: i32) -> (i32, i32) {
    %c0_i32 = arith.constant 0 : i32
    %c0_i32_0 = arith.constant 0 : i32
    return %arg0, %c0_i32 : i32, i32
  }
}

</mosaic_0001>

<llo_original>
// kernel: tpu_custom_call.1
$region0: #{tpu_custom_call.1}
  #allocation0 [shape = 'u32[]', space=smem, size = 0x4, offset = 0x4, fixed_abs, tag = 'smem constant byte address 0x4 - core index']
  #allocation1 [shape = 'u32[144,128]{1,0:T(1,128)}', space=vmem, size = 0x12000, scoped, tag = 'internal scratch']
  #allocation2 [shape = 'f32[32,32]{1,0:T(8,128)}', space=vmem, size = 0x4000, scoped, tag = 'scratch operand']
  #allocation3 [shape = 'bf16[32,96]{1,0:T(16,128)(2,1)}', space=vmem, size = 0x2000, scoped, tag = 'scratch operand']
  #allocation4 [shape = 'bf16[32,32]{1,0:T(16,128)(2,1)}', space=vmem, size = 0x2000, scoped, tag = 'scratch operand']
  %s0 = inlined_call_operand.hbm [shape: bf16[32,32], index: 0, kind: input, shape index: {}, may-alias: {0,13}]
  %s1 = inlined_call_operand.hbm [shape: f32[1,16], index: 1, kind: input, shape index: {}]
  %s2 = inlined_call_operand.hbm [shape: f32[2,1,32], index: 2, kind: input, shape index: {}]
  %s3 = inlined_call_operand.hbm [shape: f32[2,1,32], index: 3, kind: input, shape index: {}]
  %s4 = inlined_call_operand.hbm [shape: bf16[2,32,96], index: 4, kind: input, shape index: {}]
  %s5 = inlined_call_operand.hbm [shape: bf16[2,32,32], index: 5, kind: input, shape index: {}]
  %s6 = inlined_call_operand.hbm [shape: f32[2,1,32], index: 6, kind: input, shape index: {}]
  %s7 = inlined_call_operand.hbm [shape: f32[2,1,32], index: 7, kind: input, shape index: {}]
  %s8 = inlined_call_operand.hbm [shape: f32[2,1,32], index: 8, kind: input, shape index: {}]
  %s9 = inlined_call_operand.hbm [shape: bf16[2,32,128], index: 9, kind: input, shape index: {}]
  %s10 = inlined_call_operand.hbm [shape: f32[2,1,128], index: 10, kind: input, shape index: {}]
  %s11 = inlined_call_operand.hbm [shape: bf16[2,128,32], index: 11, kind: input, shape index: {}]
  %s12 = inlined_call_operand.hbm [shape: f32[2,1,32], index: 12, kind: input, shape index: {}]
  %s13 = inlined_call_operand.hbm [shape: bf16[32,32], index: 13, kind: output, shape index: {}, may-alias: {0,13}]
  %s14 = sld [smem:[#allocation0]]
  $region145: #{tpu_custom_call.1} parent=0
    _
  %s16 = ssub.s32 1, %s14
  %s17 = scalar_select 0, %s16, %s14
  $region1: #{tpu_custom_call.1} parent=0
    #allocation5 [shape = 'u8[8192]{0}', space=vmem, size = 0x2000, scoped, tag = 'input window, operand 0, single buffered']
    #allocation6 [shape = 's32[2]{0}', space=sflag, size = 0x8, scoped, tag = 'scoped memory for tpu_custom_call.1']
    #allocation7 [shape = 's32[2]{0}', space=sflag, size = 0x8, scoped, tag = 'scoped memory for tpu_custom_call.1']
    #allocation8 [shape = 'u8[512]{0}', space=vmem, size = 0x400, scoped, tag = 'input window, operand 1, single buffered']
    #allocation9 [shape = 's32[1]{0}', space=sflag, size = 0x4, scoped, tag = 'scoped memory for tpu_custom_call.1']
    #allocation10 [shape = 'u8[1024]{0}', space=vmem, size = 0x400, scoped, tag = 'input window, operand 2']
    #allocation11 [shape = 'u8[1024]{0}', space=vmem, size = 0x400, scoped, tag = 'input window, operand 3']
    #allocation12 [shape = 'u8[16384]{0}', space=vmem, size = 0x4000, scoped, tag = 'input window, operand 4']
    #allocation13 [shape = 'u8[16384]{0}', space=vmem, size = 0x4000, scoped, tag = 'input window, operand 5']
    #allocation14 [shape = 'u8[1024]{0}', space=vmem, size = 0x400, scoped, tag = 'input window, operand 6']
    #allocation15 [shape = 'u8[1024]{0}', space=vmem, size = 0x400, scoped, tag = 'input window, operand 7']
    #allocation16 [shape = 'u8[1024]{0}', space=vmem, size = 0x400, scoped, tag = 'input window, operand 8']
    #allocation17 [shape = 'u8[16384]{0}', space=vmem, size = 0x4000, scoped, tag = 'input window, operand 9']
    #allocation18 [shape = 'u8[1024]{0}', space=vmem, size = 0x400, scoped, tag = 'input window, operand 10']
    #allocation19 [shape = 'u8[65536]{0}', space=vmem, size = 0x10000, scoped, tag = 'input window, operand 11']
    #allocation20 [shape = 'u8[1024]{0}', space=vmem, size = 0x400, scoped, tag = 'input window, operand 12']
    #allocation21 [shape = 'u8[8192]{0}', space=vmem, size = 0x2000, scoped, tag = 'output window, operand 0, single buffered']
    %18 = vsyncpa [#allocation6], 0
    %19 = vsyncpa [#allocation9], 0
    %20 = vsyncpa [#allocation7], 0
    loop: start=0, step=1, limit=4
    $region2: #{tpu_custom_call.1} parent=1 // loop_pre_header
      _
    $region3: #{tpu_custom_call.1} parent=1 // loop_header
      %s22 = sphi 0, %s26
      %p23 = scmp.ge.s32.totalorder %s22, 4
      %s29 = sphi 0, %s41
      %s30 = sphi 0, %s37
      %s31 = sphi 0, %s29
      %s32 = sphi 0, %s30
      %s33 = sphi 0, %s31
      %s34 = sphi 0, %s32
      %s44 = sphi 0, %s46
      %s47 = sphi 0, %s44
      %s48 = sphi 0, %s47
      %s64 = sphi 0, %s48
      %s68 = sphi 0, %s68
      %s70 = sphi 0, %s68
      %s71 = sphi 0, %s70
      %s85 = sphi 0, %s71
      %s91 = sphi 0, %s93
      %s94 = sphi 0, %s91
      %s95 = sphi 0, %s94
      %s111 = sphi 0, %s95
      %s117 = sphi 0, %s119
      %s120 = sphi 0, %s117
      %s121 = sphi 0, %s120
      %s137 = sphi 0, %s121
      %s143 = sphi 0, %s145
      %s146 = sphi 0, %s143
      %s147 = sphi 0, %s146
      %s163 = sphi 0, %s147
      %s169 = sphi 0, %s171
      %s172 = sphi 0, %s169
      %s173 = sphi 0, %s172
      %s189 = sphi 0, %s173
      %s195 = sphi 0, %s197
      %s198 = sphi 0, %s195
      %s199 = sphi 0, %s198
      %s215 = sphi 0, %s199
      %s221 = sphi 0, %s223
      %s224 = sphi 0, %s221
      %s225 = sphi 0, %s224
      %s241 = sphi 0, %s225
      %s247 = sphi 0, %s249
      %s250 = sphi 0, %s247
      %s251 = sphi 0, %s250
      %s267 = sphi 0, %s251
      %s273 = sphi 0, %s275
      %s276 = sphi 0, %s273
      %s277 = sphi 0, %s276
      %s293 = sphi 0, %s277
      %s299 = sphi 0, %s301
      %s302 = sphi 0, %s299
      %s303 = sphi 0, %s302
      %s319 = sphi 0, %s303
      %s325 = sphi 0, %s327
      %s328 = sphi 0, %s325
      %s329 = sphi 0, %s328
      %s345 = sphi 0, %s329
      %s351 = sphi 0, %s353
      %s354 = sphi 0, %s351
      %s355 = sphi 0, %s354
      %s371 = sphi 0, %s355
      %s377 = sphi 0, %s379
      %s380 = sphi 0, %s377
      %s381 = sphi 0, %s380
      %s397 = sphi 0, %s381
    $region4: #{tpu_custom_call.1} parent=1 // loop_header_branch
      %25 = sbr.rel (%p23) target = $region8
    $region5: #{tpu_custom_call.1} parent=1 // loop_body
      %s27 = ssub.s32 %s22, 1
      %s28 = ssub.s32 %s22, 2
      %s35 = sadd.s32 1, %s30
      %p36 = scmp.ge.s32.totalorder %s35, 2
      %s37 = scalar_select %p36, 0, %s35
      %s38 = sadd.s32 1, %s29
      %s39 = scalar_select %p36, %s38, %s29
      %p40 = scmp.ge.s32.totalorder %s39, 1
      %s41 = scalar_select %p40, 0, %s39
      %s42 = ssub.s32 %s29, %s41
      %p43 = scmp.eq.s32.totalorder %s42, 0
      %s45 = sadd.s32 %s44, 1
      %s46 = scalar_select %p43, %s44, %s45
      %p49 = pneg %p43
      %p50 = scmp.eq.s32.totalorder %s22, 1
      %p51 = por %p49, %p50
      %p52 = scmp.ne.s32.totalorder %s44, %s47
      %p53 = scmp.eq.s32.totalorder %s22, 0
      %p54 = por %p52, %p53
      %p55 = scmp.ne.s32.totalorder %s44, %s47
      %p56 = scmp.eq.s32.totalorder %s27, 1
      %p57 = por %p55, %p56
      %p58 = scmp.ne.s32.totalorder %s47, %s48
      %p59 = scmp.eq.s32.totalorder %s27, 0
      %p60 = por %p58, %p59
      %p61 = scmp.ne.s32.totalorder %s47, %s48
      %p62 = scmp.eq.s32.totalorder %s28, 1
      %p63 = por %p61, %p62
      %p65 = scmp.ne.s32.totalorder %s48, %s64
      %p66 = scmp.eq.s32.totalorder %s28, 0
      %p67 = por %p65, %p66
      %s69 = sadd.s32 %s68, 1
      %p72 = scmp.eq.s32.totalorder %s22, 1
      %p73 = scmp.ne.s32.totalorder %s68, %s70
      %p74 = scmp.eq.s32.totalorder %s22, 0
      %p75 = por %p73, %p74
      %p76 = scmp.ne.s32.totalorder %s68, %s70
      %p77 = scmp.eq.s32.totalorder %s27, 1
      %p78 = por %p76, %p77
      %p79 = scmp.ne.s32.totalorder %s70, %s71
      %p80 = scmp.eq.s32.totalorder %s27, 0
      %p81 = por %p79, %p80
      %p82 = scmp.ne.s32.totalorder %s70, %s71
      %p83 = scmp.eq.s32.totalorder %s28, 1
      %p84 = por %p82, %p83
      %p86 = scmp.ne.s32.totalorder %s71, %s85
      %p87 = scmp.eq.s32.totalorder %s28, 0
      %p88 = por %p86, %p87
      %s89 = ssub.s32 %s30, %s37
      %p90 = scmp.eq.s32.totalorder %s89, 0
      %s92 = sadd.s32 %s91, 1
      %s93 = scalar_select %p90, %s91, %s92
      %p96 = pneg %p90
      %p97 = scmp.eq.s32.totalorder %s22, 1
      %p98 = por %p96, %p97
      %p99 = scmp.ne.s32.totalorder %s91, %s94
      %p100 = scmp.eq.s32.totalorder %s22, 0
      %p101 = por %p99, %p100
      %p102 = scmp.ne.s32.totalorder %s91, %s94
      %p103 = scmp.eq.s32.totalorder %s27, 1
      %p104 = por %p102, %p103
      %p105 = scmp.ne.s32.totalorder %s94, %s95
      %p106 = scmp.eq.s32.totalorder %s27, 0
      %p107 = por %p105, %p106
      %p108 = scmp.ne.s32.totalorder %s94, %s95
      %p109 = scmp.eq.s32.totalorder %s28, 1
      %p110 = por %p108, %p109
      %p112 = scmp.ne.s32.totalorder %s95, %s111
      %p113 = scmp.eq.s32.totalorder %s28, 0
      %p114 = por %p112, %p113
      %s115 = ssub.s32 %s30, %s37
      %p116 = scmp.eq.s32.totalorder %s115, 0
      %s118 = sadd.s32 %s117, 1
      %s119 = scalar_select %p116, %s117, %s118
      %p122 = pneg %p116
      %p123 = scmp.eq.s32.totalorder %s22, 1
      %p124 = por %p122, %p123
      %p125 = scmp.ne.s32.totalorder %s117, %s120
      %p126 = scmp.eq.s32.totalorder %s22, 0
      %p127 = por %p125, %p126
      %p128 = scmp.ne.s32.totalorder %s117, %s120
      %p129 = scmp.eq.s32.totalorder %s27, 1
      %p130 = por %p128, %p129
      %p131 = scmp.ne.s32.totalorder %s120, %s121
      %p132 = scmp.eq.s32.totalorder %s27, 0
      %p133 = por %p131, %p132
      %p134 = scmp.ne.s32.totalorder %s120, %s121
      %p135 = scmp.eq.s32.totalorder %s28, 1
      %p136 = por %p134, %p135
      %p138 = scmp.ne.s32.totalorder %s121, %s137
      %p139 = scmp.eq.s32.totalorder %s28, 0
      %p140 = por %p138, %p139
      %s141 = ssub.s32 %s30, %s37
      %p142 = scmp.eq.s32.totalorder %s141, 0
      %s144 = sadd.s32 %s143, 1
      %s145 = scalar_select %p142, %s143, %s144
      %p148 = pneg %p142
      %p149 = scmp.eq.s32.totalorder %s22, 1
      %p150 = por %p148, %p149
      %p151 = scmp.ne.s32.totalorder %s143, %s146
      %p152 = scmp.eq.s32.totalorder %s22, 0
      %p153 = por %p151, %p152
      %p154 = scmp.ne.s32.totalorder %s143, %s146
      %p155 = scmp.eq.s32.totalorder %s27, 1
      %p156 = por %p154, %p155
      %p157 = scmp.ne.s32.totalorder %s146, %s147
      %p158 = scmp.eq.s32.totalorder %s27, 0
      %p159 = por %p157, %p158
      %p160 = scmp.ne.s32.totalorder %s146, %s147
      %p161 = scmp.eq.s32.totalorder %s28, 1
      %p162 = por %p160, %p161
      %p164 = scmp.ne.s32.totalorder %s147, %s163
      %p165 = scmp.eq.s32.totalorder %s28, 0
      %p166 = por %p164, %p165
      %s167 = ssub.s32 %s30, %s37
      %p168 = scmp.eq.s32.totalorder %s167, 0
      %s170 = sadd.s32 %s169, 1
      %s171 = scalar_select %p168, %s169, %s170
      %p174 = pneg %p168
      %p175 = scmp.eq.s32.totalorder %s22, 1
      %p176 = por %p174, %p175
      %p177 = scmp.ne.s32.totalorder %s169, %s172
      %p178 = scmp.eq.s32.totalorder %s22, 0
      %p179 = por %p177, %p178
      %p180 = scmp.ne.s32.totalorder %s169, %s172
      %p181 = scmp.eq.s32.totalorder %s27, 1
      %p182 = por %p180, %p181
      %p183 = scmp.ne.s32.totalorder %s172, %s173
      %p184 = scmp.eq.s32.totalorder %s27, 0
      %p185 = por %p183, %p184
      %p186 = scmp.ne.s32.totalorder %s172, %s173
      %p187 = scmp.eq.s32.totalorder %s28, 1
      %p188 = por %p186, %p187
      %p190 = scmp.ne.s32.totalorder %s173, %s189
      %p191 = scmp.eq.s32.totalorder %s28, 0
      %p192 = por %p190, %p191
      %s193 = ssub.s32 %s30, %s37
      %p194 = scmp.eq.s32.totalorder %s193, 0
      %s196 = sadd.s32 %s195, 1
      %s197 = scalar_select %p194, %s195, %s196
      %p200 = pneg %p194
      %p201 = scmp.eq.s32.totalorder %s22, 1
      %p202 = por %p200, %p201
      %p203 = scmp.ne.s32.totalorder %s195, %s198
      %p204 = scmp.eq.s32.totalorder %s22, 0
      %p205 = por %p203, %p204
      %p206 = scmp.ne.s32.totalorder %s195, %s198
      %p207 = scmp.eq.s32.totalorder %s27, 1
      %p208 = por %p206, %p207
      %p209 = scmp.ne.s32.totalorder %s198, %s199
      %p210 = scmp.eq.s32.totalorder %s27, 0
      %p211 = por %p209, %p210
      %p212 = scmp.ne.s32.totalorder %s198, %s199
      %p213 = scmp.eq.s32.totalorder %s28, 1
      %p214 = por %p212, %p213
      %p216 = scmp.ne.s32.totalorder %s199, %s215
      %p217 = scmp.eq.s32.totalorder %s28, 0
      %p218 = por %p216, %p217
      %s219 = ssub.s32 %s30, %s37
      %p220 = scmp.eq.s32.totalorder %s219, 0
      %s222 = sadd.s32 %s221, 1
      %s223 = scalar_select %p220, %s221, %s222
      %p226 = pneg %p220
      %p227 = scmp.eq.s32.totalorder %s22, 1
      %p228 = por %p226, %p227
      %p229 = scmp.ne.s32.totalorder %s221, %s224
      %p230 = scmp.eq.s32.totalorder %s22, 0
      %p231 = por %p229, %p230
      %p232 = scmp.ne.s32.totalorder %s221, %s224
      %p233 = scmp.eq.s32.totalorder %s27, 1
      %p234 = por %p232, %p233
      %p235 = scmp.ne.s32.totalorder %s224, %s225
      %p236 = scmp.eq.s32.totalorder %s27, 0
      %p237 = por %p235, %p236
      %p238 = scmp.ne.s32.totalorder %s224, %s225
      %p239 = scmp.eq.s32.totalorder %s28, 1
      %p240 = por %p238, %p239
      %p242 = scmp.ne.s32.totalorder %s225, %s241
      %p243 = scmp.eq.s32.totalorder %s28, 0
      %p244 = por %p242, %p243
      %s245 = ssub.s32 %s30, %s37
      %p246 = scmp.eq.s32.totalorder %s245, 0
      %s248 = sadd.s32 %s247, 1
      %s249 = scalar_select %p246, %s247, %s248
      %p252 = pneg %p246
      %p253 = scmp.eq.s32.totalorder %s22, 1
      %p254 = por %p252, %p253
      %p255 = scmp.ne.s32.totalorder %s247, %s250
      %p256 = scmp.eq.s32.totalorder %s22, 0
      %p257 = por %p255, %p256
      %p258 = scmp.ne.s32.totalorder %s247, %s250
      %p259 = scmp.eq.s32.totalorder %s27, 1
      %p260 = por %p258, %p259
      %p261 = scmp.ne.s32.totalorder %s250, %s251
      %p262 = scmp.eq.s32.totalorder %s27, 0
      %p263 = por %p261, %p262
      %p264 = scmp.ne.s32.totalorder %s250, %s251
      %p265 = scmp.eq.s32.totalorder %s28, 1
      %p266 = por %p264, %p265
      %p268 = scmp.ne.s32.totalorder %s251, %s267
      %p269 = scmp.eq.s32.totalorder %s28, 0
      %p270 = por %p268, %p269
      %s271 = ssub.s32 %s30, %s37
      %p272 = scmp.eq.s32.totalorder %s271, 0
      %s274 = sadd.s32 %s273, 1
      %s275 = scalar_select %p272, %s273, %s274
      %p278 = pneg %p272
      %p279 = scmp.eq.s32.totalorder %s22, 1
      %p280 = por %p278, %p279
      %p281 = scmp.ne.s32.totalorder %s273, %s276
      %p282 = scmp.eq.s32.totalorder %s22, 0
      %p283 = por %p281, %p282
      %p284 = scmp.ne.s32.totalorder %s273, %s276
      %p285 = scmp.eq.s32.totalorder %s27, 1
      %p286 = por %p284, %p285
      %p287 = scmp.ne.s32.totalorder %s276, %s277
      %p288 = scmp.eq.s32.totalorder %s27, 0
      %p289 = por %p287, %p288
      %p290 = scmp.ne.s32.totalorder %s276, %s277
      %p291 = scmp.eq.s32.totalorder %s28, 1
      %p292 = por %p290, %p291
      %p294 = scmp.ne.s32.totalorder %s277, %s293
      %p295 = scmp.eq.s32.totalorder %s28, 0
      %p296 = por %p294, %p295
      %s297 = ssub.s32 %s30, %s37
      %p298 = scmp.eq.s32.totalorder %s297, 0
      %s300 = sadd.s32 %s299, 1
      %s301 = scalar_select %p298, %s299, %s300
      %p304 = pneg %p298
      %p305 = scmp.eq.s32.totalorder %s22, 1
      %p306 = por %p304, %p305
      %p307 = scmp.ne.s32.totalorder %s299, %s302
      %p308 = scmp.eq.s32.totalorder %s22, 0
      %p309 = por %p307, %p308
      %p310 = scmp.ne.s32.totalorder %s299, %s302
      %p311 = scmp.eq.s32.totalorder %s27, 1
      %p312 = por %p310, %p311
      %p313 = scmp.ne.s32.totalorder %s302, %s303
      %p314 = scmp.eq.s32.totalorder %s27, 0
      %p315 = por %p313, %p314
      %p316 = scmp.ne.s32.totalorder %s302, %s303
      %p317 = scmp.eq.s32.totalorder %s28, 1
      %p318 = por %p316, %p317
      %p320 = scmp.ne.s32.totalorder %s303, %s319
      %p321 = scmp.eq.s32.totalorder %s28, 0
      %p322 = por %p320, %p321
      %s323 = ssub.s32 %s30, %s37
      %p324 = scmp.eq.s32.totalorder %s323, 0
      %s326 = sadd.s32 %s325, 1
      %s327 = scalar_select %p324, %s325, %s326
      %p330 = pneg %p324
      %p331 = scmp.eq.s32.totalorder %s22, 1
      %p332 = por %p330, %p331
      %p333 = scmp.ne.s32.totalorder %s325, %s328
      %p334 = scmp.eq.s32.totalorder %s22, 0
      %p335 = por %p333, %p334
      %p336 = scmp.ne.s32.totalorder %s325, %s328
      %p337 = scmp.eq.s32.totalorder %s27, 1
      %p338 = por %p336, %p337
      %p339 = scmp.ne.s32.totalorder %s328, %s329
      %p340 = scmp.eq.s32.totalorder %s27, 0
      %p341 = por %p339, %p340
      %p342 = scmp.ne.s32.totalorder %s328, %s329
      %p343 = scmp.eq.s32.totalorder %s28, 1
      %p344 = por %p342, %p343
      %p346 = scmp.ne.s32.totalorder %s329, %s345
      %p347 = scmp.eq.s32.totalorder %s28, 0
      %p348 = por %p346, %p347
      %s349 = ssub.s32 %s30, %s37
      %p350 = scmp.eq.s32.totalorder %s349, 0
      %s352 = sadd.s32 %s351, 1
      %s353 = scalar_select %p350, %s351, %s352
      %p356 = pneg %p350
      %p357 = scmp.eq.s32.totalorder %s22, 1
      %p358 = por %p356, %p357
      %p359 = scmp.ne.s32.totalorder %s351, %s354
      %p360 = scmp.eq.s32.totalorder %s22, 0
      %p361 = por %p359, %p360
      %p362 = scmp.ne.s32.totalorder %s351, %s354
      %p363 = scmp.eq.s32.totalorder %s27, 1
      %p364 = por %p362, %p363
      %p365 = scmp.ne.s32.totalorder %s354, %s355
      %p366 = scmp.eq.s32.totalorder %s27, 0
      %p367 = por %p365, %p366
      %p368 = scmp.ne.s32.totalorder %s354, %s355
      %p369 = scmp.eq.s32.totalorder %s28, 1
      %p370 = por %p368, %p369
      %p372 = scmp.ne.s32.totalorder %s355, %s371
      %p373 = scmp.eq.s32.totalorder %s28, 0
      %p374 = por %p372, %p373
      %s375 = ssub.s32 %s29, %s41
      %p376 = scmp.eq.s32.totalorder %s375, 0
      %s378 = sadd.s32 %s377, 1
      %s379 = scalar_select %p376, %s377, %s378
      %p382 = pneg %p376
      %p383 = scmp.eq.s32.totalorder %s22, 1
      %p384 = por %p382, %p383
      %p385 = scmp.ne.s32.totalorder %s377, %s380
      %p386 = scmp.eq.s32.totalorder %s22, 0
      %p387 = por %p385, %p386
      %p388 = scmp.ne.s32.totalorder %s377, %s380
      %p389 = scmp.eq.s32.totalorder %s27, 1
      %p390 = por %p388, %p389
      %p391 = scmp.ne.s32.totalorder %s380, %s381
      %p392 = scmp.eq.s32.totalorder %s27, 0
      %p393 = por %p391, %p392
      %p394 = scmp.ne.s32.totalorder %s380, %s381
      %p395 = scmp.eq.s32.totalorder %s28, 1
      %p396 = por %p394, %p395
      %p398 = scmp.ne.s32.totalorder %s381, %s397
      %p399 = scmp.eq.s32.totalorder %s28, 0
      %p400 = por %p398, %p399
      %p401 = scmp.le.s32.totalorder 1, %s22
      %p402 = scmp.lt.s32.totalorder %s22, 3
      %p403 = pnand %p401, %p402
      %p404 = pneg %p403
      // Predicated region
      $region9: #{tpu_custom_call.1} parent=5 // pred_check
        _
      $region10: #{tpu_custom_call.1} parent=5 // pred_check_branch
        %406 = sbr.rel (%p403) target = $region12
      $region11: #{tpu_custom_call.1} parent=5 // pred_region
        %s407 = ssub.s32 %s22, 1
        // Predicated region
        $region13: #{tpu_custom_call.1} parent=11 // pred_check
          %p408 = pneg %p60
        $region14: #{tpu_custom_call.1} parent=11 // pred_check_branch
          %410 = sbr.rel (%p408) target = $region16
        $region15: #{tpu_custom_call.1} parent=11 // pred_region
          %s411 = smul.u32 4, %s31
          %s413 = ssub.s32 256, 256
          %414 = vsyncadd [#allocation6], %s413
          %s415 = smul.addr %s411, 64
          %s416 = scalar_lea.hbm %s0, %s415
          %s417 = sshll.u32 [#allocation5], 4
          %s418 = int_to_ptr.vmem [resolvable:$true] %s417
          %423 = dma.hbm_to_vmem [thread:$0]  %s416, 256, %s418, [#allocation6], 64, 64, 4
        $region16: #{tpu_custom_call.1} parent=11 // pred_fallthru
          _
        // Predicated region
        $region17: #{tpu_custom_call.1} parent=11 // pred_check
          %p424 = pneg %p81
        $region18: #{tpu_custom_call.1} parent=11 // pred_check_branch
          %426 = sbr.rel (%p424) target = $region20
        $region19: #{tpu_custom_call.1} parent=11 // pred_region
          %s428 = ssub.s32 16, 16
          %429 = vsyncadd [#allocation9], %s428
          %s431 = sshll.u32 [#allocation8], 4
          %s432 = int_to_ptr.vmem [resolvable:$true] %s431
          %434 = dma.hbm_to_vmem [thread:$0]  %s1, 16, %s432, [#allocation9]
        $region20: #{tpu_custom_call.1} parent=11 // pred_fallthru
          _
      $region12: #{tpu_custom_call.1} parent=5 // pred_fallthru
        _
      %p435 = scmp.lt.s32.totalorder %s22, 2
      // Predicated region
      $region21: #{tpu_custom_call.1} parent=5 // pred_check
        %p436 = pneg %p435
      $region22: #{tpu_custom_call.1} parent=5 // pred_check_branch
        %438 = sbr.rel (%p436) target = $region24
      $region23: #{tpu_custom_call.1} parent=5 // pred_region
        // Predicated region
        $region25: #{tpu_custom_call.1} parent=23 // pred_check
          %p439 = pneg %p101
        $region26: #{tpu_custom_call.1} parent=23 // pred_check_branch
          %441 = sbr.rel (%p439) target = $region28
        $region27: #{tpu_custom_call.1} parent=23 // pred_region
          %s442 = sand.u32 %s22, 1
          %s443 = scalar_lea.sflag [#allocation6], %s442
          %s444 = sand.u32 %s91, 1
          %s445 = scalar_lea.vmem [#allocation10], %s444
          %s447 = ssub.s32 16, 16
          %448 = vsyncadd %s443, %s447
          %s449 = smul.addr %s30, 16
          %s450 = scalar_lea.hbm %s2, %s449
          %s452 = sshll.u32 %s445, 4
          %s453 = int_to_ptr.vmem [resolvable:$true] %s452
          %455 = dma.hbm_to_vmem [thread:$0]  %s450, 16, %s453, %s443
        $region28: #{tpu_custom_call.1} parent=23 // pred_fallthru
          _
        // Predicated region
        $region29: #{tpu_custom_call.1} parent=23 // pred_check
          %p456 = pneg %p127
        $region30: #{tpu_custom_call.1} parent=23 // pred_check_branch
          %458 = sbr.rel (%p456) target = $region32
        $region31: #{tpu_custom_call.1} parent=23 // pred_region
          %s459 = sand.u32 %s22, 1
          %s460 = scalar_lea.sflag [#allocation6], %s459
          %s461 = sand.u32 %s117, 1
          %s462 = scalar_lea.vmem [#allocation11], %s461
          %s464 = ssub.s32 16, 16
          %465 = vsyncadd %s460, %s464
          %s466 = smul.addr %s30, 16
          %s467 = scalar_lea.hbm %s3, %s466
          %s469 = sshll.u32 %s462, 4
          %s470 = int_to_ptr.vmem [resolvable:$true] %s469
          %472 = dma.hbm_to_vmem [thread:$0]  %s467, 16, %s470, %s460
        $region32: #{tpu_custom_call.1} parent=23 // pred_fallthru
          _
        // Predicated region
        $region33: #{tpu_custom_call.1} parent=23 // pred_check
          %p473 = pneg %p153
        $region34: #{tpu_custom_call.1} parent=23 // pred_check_branch
          %475 = sbr.rel (%p473) target = $region36
        $region35: #{tpu_custom_call.1} parent=23 // pred_region
          %s476 = sand.u32 %s22, 1
          %s477 = scalar_lea.sflag [#allocation6], %s476
          %s478 = sand.u32 %s143, 1
          %s479 = smul.addr %s478, 16
          %s480 = scalar_lea.vmem [#allocation12], %s479
          %s482 = ssub.s32 256, 256
          %483 = vsyncadd %s477, %s482
          %s484 = smul.addr %s30, 4
          %s485 = smul.addr %s484, 64
          %s486 = scalar_lea.hbm %s4, %s485
          %s487 = sshll.u32 %s480, 4
          %s488 = int_to_ptr.vmem [resolvable:$true] %s487
          %493 = dma.hbm_to_vmem [thread:$0]  %s486, 256, %s488, %s477, 64, 64, 4
        $region36: #{tpu_custom_call.1} parent=23 // pred_fallthru
          _
        // Predicated region
        $region37: #{tpu_custom_call.1} parent=23 // pred_check
          %p494 = pneg %p179
        $region38: #{tpu_custom_call.1} parent=23 // pred_check_branch
          %496 = sbr.rel (%p494) target = $region40
        $region39: #{tpu_custom_call.1} parent=23 // pred_region
          %s497 = sand.u32 %s22, 1
          %s498 = scalar_lea.sflag [#allocation6], %s497
          %s499 = sand.u32 %s169, 1
          %s500 = smul.addr %s499, 16
          %s501 = scalar_lea.vmem [#allocation13], %s500
          %s503 = ssub.s32 256, 256
          %504 = vsyncadd %s498, %s503
          %s505 = smul.addr %s30, 4
          %s506 = smul.addr %s505, 64
          %s507 = scalar_lea.hbm %s5, %s506
          %s508 = sshll.u32 %s501, 4
          %s509 = int_to_ptr.vmem [resolvable:$true] %s508
          %514 = dma.hbm_to_vmem [thread:$0]  %s507, 256, %s509, %s498, 64, 64, 4
        $region40: #{tpu_custom_call.1} parent=23 // pred_fallthru
          _
        // Predicated region
        $region41: #{tpu_custom_call.1} parent=23 // pred_check
          %p515 = pneg %p205
        $region42: #{tpu_custom_call.1} parent=23 // pred_check_branch
          %517 = sbr.rel (%p515) target = $region44
        $region43: #{tpu_custom_call.1} parent=23 // pred_region
          %s518 = sand.u32 %s22, 1
          %s519 = scalar_lea.sflag [#allocation6], %s518
          %s520 = sand.u32 %s195, 1
          %s521 = scalar_lea.vmem [#allocation14], %s520
          %s523 = ssub.s32 16, 16
          %524 = vsyncadd %s519, %s523
          %s525 = smul.addr %s30, 16
          %s526 = scalar_lea.hbm %s6, %s525
          %s528 = sshll.u32 %s521, 4
          %s529 = int_to_ptr.vmem [resolvable:$true] %s528
          %531 = dma.hbm_to_vmem [thread:$0]  %s526, 16, %s529, %s519
        $region44: #{tpu_custom_call.1} parent=23 // pred_fallthru
          _
        // Predicated region
        $region45: #{tpu_custom_call.1} parent=23 // pred_check
          %p532 = pneg %p231
        $region46: #{tpu_custom_call.1} parent=23 // pred_check_branch
          %534 = sbr.rel (%p532) target = $region48
        $region47: #{tpu_custom_call.1} parent=23 // pred_region
          %s535 = sand.u32 %s22, 1
          %s536 = scalar_lea.sflag [#allocation6], %s535
          %s537 = sand.u32 %s221, 1
          %s538 = scalar_lea.vmem [#allocation15], %s537
          %s540 = ssub.s32 16, 16
          %541 = vsyncadd %s536, %s540
          %s542 = smul.addr %s30, 16
          %s543 = scalar_lea.hbm %s7, %s542
          %s545 = sshll.u32 %s538, 4
          %s546 = int_to_ptr.vmem [resolvable:$true] %s545
          %548 = dma.hbm_to_vmem [thread:$0]  %s543, 16, %s546, %s536
        $region48: #{tpu_custom_call.1} parent=23 // pred_fallthru
          _
        // Predicated region
        $region49: #{tpu_custom_call.1} parent=23 // pred_check
          %p549 = pneg %p257
        $region50: #{tpu_custom_call.1} parent=23 // pred_check_branch
          %551 = sbr.rel (%p549) target = $region52
        $region51: #{tpu_custom_call.1} parent=23 // pred_region
          %s552 = sand.u32 %s22, 1
          %s553 = scalar_lea.sflag [#allocation6], %s552
          %s554 = sand.u32 %s247, 1
          %s555 = scalar_lea.vmem [#allocation16], %s554
          %s557 = ssub.s32 16, 16
          %558 = vsyncadd %s553, %s557
          %s559 = smul.addr %s30, 16
          %s560 = scalar_lea.hbm %s8, %s559
          %s562 = sshll.u32 %s555, 4
          %s563 = int_to_ptr.vmem [resolvable:$true] %s562
          %565 = dma.hbm_to_vmem [thread:$0]  %s560, 16, %s563, %s553
        $region52: #{tpu_custom_call.1} parent=23 // pred_fallthru
          _
        // Predicated region
        $region53: #{tpu_custom_call.1} parent=23 // pred_check
          %p566 = pneg %p283
        $region54: #{tpu_custom_call.1} parent=23 // pred_check_branch
          %568 = sbr.rel (%p566) target = $region56
        $region55: #{tpu_custom_call.1} parent=23 // pred_region
          %s569 = sand.u32 %s22, 1
          %s570 = scalar_lea.sflag [#allocation6], %s569
          %s571 = sand.u32 %s273, 1
          %s572 = smul.addr %s571, 16
          %s573 = scalar_lea.vmem [#allocation17], %s572
          %s575 = ssub.s32 256, 256
          %576 = vsyncadd %s570, %s575
          %s577 = smul.addr %s30, 4
          %s578 = smul.addr %s577, 64
          %s579 = scalar_lea.hbm %s9, %s578
          %s580 = sshll.u32 %s573, 4
          %s581 = int_to_ptr.vmem [resolvable:$true] %s580
          %586 = dma.hbm_to_vmem [thread:$0]  %s579, 256, %s581, %s570, 64, 64, 4
        $region56: #{tpu_custom_call.1} parent=23 // pred_fallthru
          _
        // Predicated region
        $region57: #{tpu_custom_call.1} parent=23 // pred_check
          %p587 = pneg %p309
        $region58: #{tpu_custom_call.1} parent=23 // pred_check_branch
          %589 = sbr.rel (%p587) target = $region60
        $region59: #{tpu_custom_call.1} parent=23 // pred_region
          %s590 = sand.u32 %s22, 1
          %s591 = scalar_lea.sflag [#allocation6], %s590
          %s592 = sand.u32 %s299, 1
          %s593 = scalar_lea.vmem [#allocation18], %s592
          %s595 = ssub.s32 16, 16
          %596 = vsyncadd %s591, %s595
          %s597 = smul.addr %s30, 16
          %s598 = scalar_lea.hbm %s10, %s597
          %s600 = sshll.u32 %s593, 4
          %s601 = int_to_ptr.vmem [resolvable:$true] %s600
          %603 = dma.hbm_to_vmem [thread:$0]  %s598, 16, %s601, %s591
        $region60: #{tpu_custom_call.1} parent=23 // pred_fallthru
          _
        // Predicated region
        $region61: #{tpu_custom_call.1} parent=23 // pred_check
          %p604 = pneg %p335
        $region62: #{tpu_custom_call.1} parent=23 // pred_check_branch
          %606 = sbr.rel (%p604) target = $region64
        $region63: #{tpu_custom_call.1} parent=23 // pred_region
          %s607 = sand.u32 %s22, 1
          %s608 = scalar_lea.sflag [#allocation6], %s607
          %s609 = sand.u32 %s325, 1
          %s610 = smul.addr %s609, 64
          %s611 = scalar_lea.vmem [#allocation19], %s610
          %s613 = ssub.s32 1024, 1024
          %614 = vsyncadd %s608, %s613
          %s615 = smul.addr %s30, 16
          %s616 = smul.addr %s615, 64
          %s617 = scalar_lea.hbm %s11, %s616
          %s618 = sshll.u32 %s611, 4
          %s619 = int_to_ptr.vmem [resolvable:$true] %s618
          %624 = dma.hbm_to_vmem [thread:$0]  %s617, 1024, %s619, %s608, 64, 64, 4
        $region64: #{tpu_custom_call.1} parent=23 // pred_fallthru
          _
        // Predicated region
        $region65: #{tpu_custom_call.1} parent=23 // pred_check
          %p625 = pneg %p361
        $region66: #{tpu_custom_call.1} parent=23 // pred_check_branch
          %627 = sbr.rel (%p625) target = $region68
        $region67: #{tpu_custom_call.1} parent=23 // pred_region
          %s628 = sand.u32 %s22, 1
          %s629 = scalar_lea.sflag [#allocation6], %s628
          %s630 = sand.u32 %s351, 1
          %s631 = scalar_lea.vmem [#allocation20], %s630
          %s633 = ssub.s32 16, 16
          %634 = vsyncadd %s629, %s633
          %s635 = smul.addr %s30, 16
          %s636 = scalar_lea.hbm %s12, %s635
          %s638 = sshll.u32 %s631, 4
          %s639 = int_to_ptr.vmem [resolvable:$true] %s638
          %641 = dma.hbm_to_vmem [thread:$0]  %s636, 16, %s639, %s629
        $region68: #{tpu_custom_call.1} parent=23 // pred_fallthru
          _
      $region24: #{tpu_custom_call.1} parent=5 // pred_fallthru
        _
      %p642 = scmp.le.s32.totalorder 1, %s22
      %p643 = scmp.lt.s32.totalorder %s22, 3
      %p644 = pnand %p642, %p643
      %p645 = pneg %p644
      // Predicated region
      $region69: #{tpu_custom_call.1} parent=5 // pred_check
        _
      $region70: #{tpu_custom_call.1} parent=5 // pred_check_branch
        %647 = sbr.rel (%p644) target = $region72
      $region71: #{tpu_custom_call.1} parent=5 // pred_region
        %s648 = ssub.s32 %s22, 1
        // Predicated region
        $region73: #{tpu_custom_call.1} parent=71 // pred_check
          %p649 = pneg %p60
        $region74: #{tpu_custom_call.1} parent=71 // pred_check_branch
          %651 = sbr.rel (%p649) target = $region76
        $region75: #{tpu_custom_call.1} parent=71 // pred_region
          %652 = dma.done [#allocation6], 256
        $region76: #{tpu_custom_call.1} parent=71 // pred_fallthru
          _
        // Predicated region
        $region77: #{tpu_custom_call.1} parent=71 // pred_check
          %p653 = pneg %p81
        $region78: #{tpu_custom_call.1} parent=71 // pred_check_branch
          %655 = sbr.rel (%p653) target = $region80
        $region79: #{tpu_custom_call.1} parent=71 // pred_region
          %656 = dma.done [#allocation9], 16
        $region80: #{tpu_custom_call.1} parent=71 // pred_fallthru
          _
        %s657 = sand.u32 %s27, 1
        %s658 = scalar_lea.sflag [#allocation6], %s657
        %s659 = sand.u32 %s94, 1
        %s660 = scalar_lea.vmem [#allocation10], %s659
        // Predicated region
        $region81: #{tpu_custom_call.1} parent=71 // pred_check
          %p661 = pneg %p107
        $region82: #{tpu_custom_call.1} parent=71 // pred_check_branch
          %663 = sbr.rel (%p661) target = $region84
        $region83: #{tpu_custom_call.1} parent=71 // pred_region
          %664 = dma.done %s658, 16
        $region84: #{tpu_custom_call.1} parent=71 // pred_fallthru
          _
        %s665 = sand.u32 %s27, 1
        %s666 = scalar_lea.sflag [#allocation6], %s665
        %s667 = sand.u32 %s120, 1
        %s668 = scalar_lea.vmem [#allocation11], %s667
        // Predicated region
        $region85: #{tpu_custom_call.1} parent=71 // pred_check
          %p669 = pneg %p133
        $region86: #{tpu_custom_call.1} parent=71 // pred_check_branch
          %671 = sbr.rel (%p669) target = $region88
        $region87: #{tpu_custom_call.1} parent=71 // pred_region
          %672 = dma.done %s666, 16
        $region88: #{tpu_custom_call.1} parent=71 // pred_fallthru
          _
        %s673 = sand.u32 %s27, 1
        %s674 = scalar_lea.sflag [#allocation6], %s673
        %s675 = sand.u32 %s146, 1
        %s676 = smul.addr %s675, 16
        %s677 = scalar_lea.vmem [#allocation12], %s676
        // Predicated region
        $region89: #{tpu_custom_call.1} parent=71 // pred_check
          %p678 = pneg %p159
        $region90: #{tpu_custom_call.1} parent=71 // pred_check_branch
          %680 = sbr.rel (%p678) target = $region92
        $region91: #{tpu_custom_call.1} parent=71 // pred_region
          %681 = dma.done %s674, 256
        $region92: #{tpu_custom_call.1} parent=71 // pred_fallthru
          _
        %s682 = sand.u32 %s27, 1
        %s683 = scalar_lea.sflag [#allocation6], %s682
        %s684 = sand.u32 %s172, 1
        %s685 = smul.addr %s684, 16
        %s686 = scalar_lea.vmem [#allocation13], %s685
        // Predicated region
        $region93: #{tpu_custom_call.1} parent=71 // pred_check
          %p687 = pneg %p185
        $region94: #{tpu_custom_call.1} parent=71 // pred_check_branch
          %689 = sbr.rel (%p687) target = $region96
        $region95: #{tpu_custom_call.1} parent=71 // pred_region
          %690 = dma.done %s683, 256
        $region96: #{tpu_custom_call.1} parent=71 // pred_fallthru
          _
        %s691 = sand.u32 %s27, 1
        %s692 = scalar_lea.sflag [#allocation6], %s691
        %s693 = sand.u32 %s198, 1
        %s694 = scalar_lea.vmem [#allocation14], %s693
        // Predicated region
        $region97: #{tpu_custom_call.1} parent=71 // pred_check
          %p695 = pneg %p211
        $region98: #{tpu_custom_call.1} parent=71 // pred_check_branch
          %697 = sbr.rel (%p695) target = $region100
        $region99: #{tpu_custom_call.1} parent=71 // pred_region
          %698 = dma.done %s692, 16
        $region100: #{tpu_custom_call.1} parent=71 // pred_fallthru
          _
        %s699 = sand.u32 %s27, 1
        %s700 = scalar_lea.sflag [#allocation6], %s699
        %s701 = sand.u32 %s224, 1
        %s702 = scalar_lea.vmem [#allocation15], %s701
        // Predicated region
        $region101: #{tpu_custom_call.1} parent=71 // pred_check
          %p703 = pneg %p237
        $region102: #{tpu_custom_call.1} parent=71 // pred_check_branch
          %705 = sbr.rel (%p703) target = $region104
        $region103: #{tpu_custom_call.1} parent=71 // pred_region
          %706 = dma.done %s700, 16
        $region104: #{tpu_custom_call.1} parent=71 // pred_fallthru
          _
        %s707 = sand.u32 %s27, 1
        %s708 = scalar_lea.sflag [#allocation6], %s707
        %s709 = sand.u32 %s250, 1
        %s710 = scalar_lea.vmem [#allocation16], %s709
        // Predicated region
        $region105: #{tpu_custom_call.1} parent=71 // pred_check
          %p711 = pneg %p263
        $region106: #{tpu_custom_call.1} parent=71 // pred_check_branch
          %713 = sbr.rel (%p711) target = $region108
        $region107: #{tpu_custom_call.1} parent=71 // pred_region
          %714 = dma.done %s708, 16
        $region108: #{tpu_custom_call.1} parent=71 // pred_fallthru
          _
        %s715 = sand.u32 %s27, 1
        %s716 = scalar_lea.sflag [#allocation6], %s715
        %s717 = sand.u32 %s276, 1
        %s718 = smul.addr %s717, 16
        %s719 = scalar_lea.vmem [#allocation17], %s718
        // Predicated region
        $region109: #{tpu_custom_call.1} parent=71 // pred_check
          %p720 = pneg %p289
        $region110: #{tpu_custom_call.1} parent=71 // pred_check_branch
          %722 = sbr.rel (%p720) target = $region112
        $region111: #{tpu_custom_call.1} parent=71 // pred_region
          %723 = dma.done %s716, 256
        $region112: #{tpu_custom_call.1} parent=71 // pred_fallthru
          _
        %s724 = sand.u32 %s27, 1
        %s725 = scalar_lea.sflag [#allocation6], %s724
        %s726 = sand.u32 %s302, 1
        %s727 = scalar_lea.vmem [#allocation18], %s726
        // Predicated region
        $region113: #{tpu_custom_call.1} parent=71 // pred_check
          %p728 = pneg %p315
        $region114: #{tpu_custom_call.1} parent=71 // pred_check_branch
          %730 = sbr.rel (%p728) target = $region116
        $region115: #{tpu_custom_call.1} parent=71 // pred_region
          %731 = dma.done %s725, 16
        $region116: #{tpu_custom_call.1} parent=71 // pred_fallthru
          _
        %s732 = sand.u32 %s27, 1
        %s733 = scalar_lea.sflag [#allocation6], %s732
        %s734 = sand.u32 %s328, 1
        %s735 = smul.addr %s734, 64
        %s736 = scalar_lea.vmem [#allocation19], %s735
        // Predicated region
        $region117: #{tpu_custom_call.1} parent=71 // pred_check
          %p737 = pneg %p341
        $region118: #{tpu_custom_call.1} parent=71 // pred_check_branch
          %739 = sbr.rel (%p737) target = $region120
        $region119: #{tpu_custom_call.1} parent=71 // pred_region
          %740 = dma.done %s733, 1024
        $region120: #{tpu_custom_call.1} parent=71 // pred_fallthru
          _
        %s741 = sand.u32 %s27, 1
        %s742 = scalar_lea.sflag [#allocation6], %s741
        %s743 = sand.u32 %s354, 1
        %s744 = scalar_lea.vmem [#allocation20], %s743
        // Predicated region
        $region121: #{tpu_custom_call.1} parent=71 // pred_check
          %p745 = pneg %p367
        $region122: #{tpu_custom_call.1} parent=71 // pred_check_branch
          %747 = sbr.rel (%p745) target = $region124
        $region123: #{tpu_custom_call.1} parent=71 // pred_region
          %748 = dma.done %s742, 16
        $region124: #{tpu_custom_call.1} parent=71 // pred_fallthru
          _
        %p749 = pneg %p60
        %p750 = pneg %p57
        %p751 = pneg %p81
        %p752 = pneg %p78
        %s753 = sand.u32 %s27, 1
        %s754 = scalar_lea.sflag [#allocation6], %s753
        %s755 = sand.u32 %s94, 1
        %s756 = scalar_lea.vmem [#allocation10], %s755
        %p757 = pneg %p107
        %p758 = pneg %p104
        %s759 = sand.u32 %s27, 1
        %s760 = scalar_lea.sflag [#allocation6], %s759
        %s761 = sand.u32 %s120, 1
        %s762 = scalar_lea.vmem [#allocation11], %s761
        %p763 = pneg %p133
        %p764 = pneg %p130
        %s765 = sand.u32 %s27, 1
        %s766 = scalar_lea.sflag [#allocation6], %s765
        %s767 = sand.u32 %s146, 1
        %s768 = smul.addr %s767, 16
        %s769 = scalar_lea.vmem [#allocation12], %s768
        %p770 = pneg %p159
        %p771 = pneg %p156
        %s772 = sand.u32 %s27, 1
        %s773 = scalar_lea.sflag [#allocation6], %s772
        %s774 = sand.u32 %s172, 1
        %s775 = smul.addr %s774, 16
        %s776 = scalar_lea.vmem [#allocation13], %s775
        %p777 = pneg %p185
        %p778 = pneg %p182
        %s779 = sand.u32 %s27, 1
        %s780 = scalar_lea.sflag [#allocation6], %s779
        %s781 = sand.u32 %s198, 1
        %s782 = scalar_lea.vmem [#allocation14], %s781
        %p783 = pneg %p211
        %p784 = pneg %p208
        %s785 = sand.u32 %s27, 1
        %s786 = scalar_lea.sflag [#allocation6], %s785
        %s787 = sand.u32 %s224, 1
        %s788 = scalar_lea.vmem [#allocation15], %s787
        %p789 = pneg %p237
        %p790 = pneg %p234
        %s791 = sand.u32 %s27, 1
        %s792 = scalar_lea.sflag [#allocation6], %s791
        %s793 = sand.u32 %s250, 1
        %s794 = scalar_lea.vmem [#allocation16], %s793
        %p795 = pneg %p263
        %p796 = pneg %p260
        %s797 = sand.u32 %s27, 1
        %s798 = scalar_lea.sflag [#allocation6], %s797
        %s799 = sand.u32 %s276, 1
        %s800 = smul.addr %s799, 16
        %s801 = scalar_lea.vmem [#allocation17], %s800
        %p802 = pneg %p289
        %p803 = pneg %p286
        %s804 = sand.u32 %s27, 1
        %s805 = scalar_lea.sflag [#allocation6], %s804
        %s806 = sand.u32 %s302, 1
        %s807 = scalar_lea.vmem [#allocation18], %s806
        %p808 = pneg %p315
        %p809 = pneg %p312
        %s810 = sand.u32 %s27, 1
        %s811 = scalar_lea.sflag [#allocation6], %s810
        %s812 = sand.u32 %s328, 1
        %s813 = smul.addr %s812, 64
        %s814 = scalar_lea.vmem [#allocation19], %s813
        %p815 = pneg %p341
        %p816 = pneg %p338
        %s817 = sand.u32 %s27, 1
        %s818 = scalar_lea.sflag [#allocation6], %s817
        %s819 = sand.u32 %s354, 1
        %s820 = scalar_lea.vmem [#allocation20], %s819
        %p821 = pneg %p367
        %p822 = pneg %p364
        %p823 = pneg %p393
        %p824 = pneg %p390
        %s825 = smul.u32 4, %s31
        %s826 = smul.u32 4, %s31
        %p828 = scmp.eq.s32.totalorder %s32, 0
        // Predicated region
        $region125: #{tpu_custom_call.1} parent=71 // pred_check
          %p829 = pneg %p828
        $region126: #{tpu_custom_call.1} parent=71 // pred_check_branch
          %831 = sbr.rel (%p829) target = $region128
        $region127: #{tpu_custom_call.1} parent=71 // pred_region
          %v832 = vld [vmem:[#allocation5] sm:$0xf]
          %v833 = vld [vmem:[#allocation5 + $0x4] sm:$0xf]
          %v834 = vld [vmem:[#allocation5 + $0x8] sm:$0xf]
          %v835 = vld [vmem:[#allocation5 + $0xc] sm:$0xf]
          %v836 = vunpack.c.l.bf16 %v832
          %v837 = vunpack.c.l.bf16 %v833
          %v838 = vunpack.c.l.bf16 %v834
          %v839 = vunpack.c.l.bf16 %v835
          %vm840 = vcmask 261120
          %841 = vst.msk [vmem:[#allocation2] sm:$0xff] %vm840, %v836
          %842 = vst.msk [vmem:[#allocation2 + $0x8] sm:$0xff] %vm840, %v837
          %843 = vst.msk [vmem:[#allocation2 + $0x10] sm:$0xff] %vm840, %v838
          %844 = vst.msk [vmem:[#allocation2 + $0x18] sm:$0xff] %vm840, %v839
        $region128: #{tpu_custom_call.1} parent=71 // pred_fallthru
          _
        %v845 = vld [vmem:[#allocation2] sm:$0xff]
        %v846 = vld [vmem:[#allocation2 + $0x8] sm:$0xff]
        %v847 = vld [vmem:[#allocation2 + $0x10] sm:$0xff]
        %v848 = vld [vmem:[#allocation2 + $0x18] sm:$0xff]
        %v849 = vld [vmem:[%s660] sm:$0x1]
        %v850 = vld [vmem:[%s668] sm:$0x1]
        %vm851 = vcmask 261120
        %v852 = vsel %vm851, %v845, 0.0
        %853 = vadd.xlane.f32.xlu0 %v852
        %v854 = vpop.xlane.xlu0 %853
        %v855 = vsel %vm851, %v846, 0.0
        %856 = vadd.xlane.f32.xlu0 %v855
        %v857 = vpop.xlane.xlu0 %856
        %v858 = vsel %vm851, %v847, 0.0
        %859 = vadd.xlane.f32.xlu0 %v858
        %v860 = vpop.xlane.xlu0 %859
        %v861 = vsel %vm851, %v848, 0.0
        %862 = vadd.xlane.f32.xlu0 %v861
        %v863 = vpop.xlane.xlu0 %862
        %v864 = vrcp.pop 32.0
        %v865 = vmul.f32 %v854, %v864
        %v866 = vmul.f32 %v857, %v864
        %v867 = vmul.f32 %v860, %v864
        %v868 = vmul.f32 %v863, %v864
        %v869 = vsub.f32 %v845, %v865
        %v870 = vsub.f32 %v846, %v866
        %v871 = vsub.f32 %v847, %v867
        %v872 = vsub.f32 %v848, %v868
        %v873 = vmul.f32 %v869, %v869
        %v874 = vmul.f32 %v870, %v870
        %v875 = vmul.f32 %v871, %v871
        %v876 = vmul.f32 %v872, %v872
        %v877 = vsel %vm851, %v873, 0.0
        %878 = vadd.xlane.f32.xlu0 %v877
        %v879 = vpop.xlane.xlu0 %878
        %v880 = vsel %vm851, %v874, 0.0
        %881 = vadd.xlane.f32.xlu0 %v880
        %v882 = vpop.xlane.xlu0 %881
        %v883 = vsel %vm851, %v875, 0.0
        %884 = vadd.xlane.f32.xlu0 %v883
        %v885 = vpop.xlane.xlu0 %884
        %v886 = vsel %vm851, %v876, 0.0
        %887 = vadd.xlane.f32.xlu0 %v886
        %v888 = vpop.xlane.xlu0 %887
        %v889 = vmul.f32 %v879, %v864
        %v890 = vmul.f32 %v882, %v864
        %v891 = vmul.f32 %v885, %v864
        %v892 = vmul.f32 %v888, %v864
        %v893 = vadd.f32 %v889, 1e-05
        %v894 = vadd.f32 %v890, 1e-05
        %v895 = vadd.f32 %v891, 1e-05
        %v896 = vadd.f32 %v892, 1e-05
        %v897 = vrsqrt.pop %v893
        %v898 = vrsqrt.pop %v894
        %v899 = vrsqrt.pop %v895
        %v900 = vrsqrt.pop %v896
        %v901 = vmul.f32 %v869, %v897
        %v902 = vmul.f32 %v870, %v898
        %v903 = vmul.f32 %v871, %v899
        %v904 = vmul.f32 %v872, %v900
        %v906 = vlaneseq
        %v907 = vshrl.u32 %v906, 7
        %v908 = vsub.s32 0, %v907
        %v909 = vrot.slane %v849, %v908
        %v911 = vmul.f32 %v901, %v909
        %v912 = vmul.f32 %v902, %v909
        %v913 = vmul.f32 %v903, %v909
        %v914 = vmul.f32 %v904, %v909
        %v916 = vlaneseq
        %v917 = vshrl.u32 %v916, 7
        %v918 = vsub.s32 0, %v917
        %v919 = vrot.slane %v850, %v918
        %v921 = vadd.f32 %v911, %v919
        %v922 = vadd.f32 %v912, %v919
        %v923 = vadd.f32 %v913, %v919
        %v924 = vadd.f32 %v914, %v919
        %v925 = vpack.c.bf16 %v922, %v921
        %v926 = vpack.c.bf16 %v924, %v923
        %v927 = vld [vmem:[%s677] sm:$0xf]
        %v928 = vld [vmem:[%s677 + $0x4] sm:$0xf]
        %v929 = vld [vmem:[%s677 + $0x8] sm:$0xf]
        %v930 = vld [vmem:[%s677 + $0xc] sm:$0xf]
        %v935 = vunpack.c.l.b16 %v927
        %v936 = vunpack.c.l.b16 %v928
        %v937 = vunpack.c.l.b16 %v929
        %v938 = vunpack.c.l.b16 %v930
        %v939 = vpack.c.b16 %v936, %v935
        %v940 = vpack.c.b16 %v938, %v937
        %v944 = vsel %vm851, %v925, 0
        %v947 = vsel %vm851, %v926, 0
        %949 = vmatprep.subr.bf16.mxu0 0
        %950 = vmatpush1.bf16.msra.mxu0 %v939
        %951 = vmatprep.subr.bf16.mxu0 0
        %952 = vmatpush1.bf16.msra.mxu0 %v940
        %953 = vmatprep.subr.bf16.mxu0 0
        %954 = vmatpush1.bf16.msra.mxu0 0
        %955 = vmatprep.subr.bf16.mxu0 0
        %956 = vmatpush1.bf16.msra.mxu0 0
        %957 = vmatprep.subr.bf16.mxu0 0
        %958 = vmatpush1.bf16.msra.mxu0 0
        %959 = vmatprep.subr.bf16.mxu0 0
        %960 = vmatpush1.bf16.msra.mxu0 0
        %961 = vmatprep.subr.bf16.mxu0 0
        %962 = vmatpush1.bf16.msra.mxu0 0
        %963 = vmatprep.subr.bf16.mxu0 0
        %964 = vmatpush1.bf16.msra.mxu0 0
        %965 = vmatprep.subr.bf16.mxu0 0
        %966 = vmatpush1.bf16.msra.mxu0 0
        %967 = vmatprep.subr.bf16.mxu0 0
        %968 = vmatpush1.bf16.msra.mxu0 0
        %969 = vmatprep.subr.bf16.mxu0 0
        %970 = vmatpush1.bf16.msra.mxu0 0
        %971 = vmatprep.subr.bf16.mxu0 0
        %972 = vmatpush1.bf16.msra.mxu0 0
        %973 = vmatprep.subr.bf16.mxu0 0
        %974 = vmatpush1.bf16.msra.mxu0 0
        %975 = vmatprep.subr.bf16.mxu0 0
        %976 = vmatpush1.bf16.msra.mxu0 0
        %977 = vmatprep.subr.bf16.mxu0 0
        %978 = vmatpush1.bf16.msra.mxu0 0
        %979 = vmatprep.subr.bf16.mxu0 0
        %980 = vmatpush1.bf16.msra.mxu0 0
        %981 = vmatprep.mubr.bf16.mxu0 0
        %982 = vmatmul.mubr.bf16.gmra.mrb[0].mxu0 %v944
        %v983 = vpop.f32.mrb[0].mxu0
        %v984 = vadd.f32 0.0, %v983
        %v985 = vpop.f32.mrb[0].mxu0
        %v986 = vpop.f32.mrb[0].mxu0
        %v987 = vadd.f32 0.0, %v986
        %v988 = vpop.f32.mrb[0].mxu0
        %989 = vmatprep.mubr.bf16.mxu0 0
        %990 = vmatmul.mubr.bf16.gmra.mrb[0].mxu0 %v947
        %v991 = vpop.f32.mrb[0].mxu0
        %v992 = vadd.f32 0.0, %v991
        %v993 = vpop.f32.mrb[0].mxu0
        %v994 = vpop.f32.mrb[0].mxu0
        %v995 = vadd.f32 0.0, %v994
        %v996 = vpop.f32.mrb[0].mxu0
        %997 = vdwg.mxu0
        %v998 = vpack.c.bf16 %v987, %v984
        %v999 = vpack.c.bf16 %v995, %v992
        %vm1000 = vcmask 785408
        %1001 = vst.msk [vmem:[#allocation3] sm:$0xff] %vm1000, %v998
        %1002 = vst.msk [vmem:[#allocation3 + $0x8] sm:$0xff] %vm1000, %v999
        %v1003 = vld [vmem:[#allocation8] sm:$0x1]
        %v1004 = vld [vmem:[#allocation3] sm:$0xff]
        %v1005 = vld [vmem:[#allocation3 + $0x8] sm:$0xff]
        %1007 = vrot.lane.b32.xlu0 %v1004, 96
        %v1008 = vpop.permute.xlu0 %1007
        %vm1009 = vcmask 130048
        %v1011 = vsel %vm1009, %v1004, 0
        %v1014 = vsel %vm1009, %v1008, 0
        %1016 = vmatprep.subr.bf16.mxu0 0
        %1017 = vmatpush1.bf16.xpose.msra.mxu0 %v1014
        %1018 = vmatprep.subr.bf16.mxu0 0
        %1019 = vmatpush1.bf16.xpose.msra.mxu0 0
        %1020 = vmatprep.subr.bf16.mxu0 0
        %1021 = vmatpush1.bf16.xpose.msra.mxu0 0
        %1022 = vmatprep.subr.bf16.mxu0 0
        %1023 = vmatpush1.bf16.xpose.msra.mxu0 0
        %1024 = vmatprep.subr.bf16.mxu0 0
        %1025 = vmatpush1.bf16.xpose.msra.mxu0 0
        %1026 = vmatprep.subr.bf16.mxu0 0
        %1027 = vmatpush1.bf16.xpose.msra.mxu0 0
        %1028 = vmatprep.subr.bf16.mxu0 0
        %1029 = vmatpush1.bf16.xpose.msra.mxu0 0
        %1030 = vmatprep.subr.bf16.mxu0 0
        %1031 = vmatpush1.bf16.xpose.msra.mxu0 0
        %1032 = vmatprep.subr.bf16.mxu0 0
        %1033 = vmatpush1.bf16.xpose.msra.mxu0 0
        %1034 = vmatprep.subr.bf16.mxu0 0
        %1035 = vmatpush1.bf16.xpose.msra.mxu0 0
        %1036 = vmatprep.subr.bf16.mxu0 0
        %1037 = vmatpush1.bf16.xpose.msra.mxu0 0
        %1038 = vmatprep.subr.bf16.mxu0 0
        %1039 = vmatpush1.bf16.xpose.msra.mxu0 0
        %1040 = vmatprep.subr.bf16.mxu0 0
        %1041 = vmatpush1.bf16.xpose.msra.mxu0 0
        %1042 = vmatprep.subr.bf16.mxu0 0
        %1043 = vmatpush1.bf16.xpose.msra.mxu0 0
        %1044 = vmatprep.subr.bf16.mxu0 0
        %1045 = vmatpush1.bf16.xpose.msra.mxu0 0
        %1046 = vmatprep.subr.bf16.mxu0 0
        %1047 = vmatpush1.bf16.xpose.msra.mxu0 0
        %1048 = vmatprep.mubr.bf16.mxu0 0
        %1049 = vmatmul.mubr.bf16.gmra.mrb[0].mxu0 %v1011
        %v1050 = vpop.f32.mrb[0].mxu0
        %v1051 = vadd.f32 0.0, %v1050
        %v1052 = vpop.f32.mrb[0].mxu0
        %v1053 = vpop.f32.mrb[0].mxu0
        %v1054 = vadd.f32 0.0, %v1053
        %v1055 = vpop.f32.mrb[0].mxu0
        %1056 = vdwg.mxu0
        %1058 = vrot.lane.b32.xlu0 %v1005, 96
        %v1059 = vpop.permute.xlu0 %1058
        %v1061 = vsel %vm1009, %v1005, 0
        %v1064 = vsel %vm1009, %v1059, 0
        %1066 = vmatprep.subr.bf16.mxu0 0
        %1067 = vmatpush1.bf16.xpose.msra.mxu0 %v1064
        %1068 = vmatprep.subr.bf16.mxu0 0
        %1069 = vmatpush1.bf16.xpose.msra.mxu0 0
        %1070 = vmatprep.subr.bf16.mxu0 0
        %1071 = vmatpush1.bf16.xpose.msra.mxu0 0
        %1072 = vmatprep.subr.bf16.mxu0 0
        %1073 = vmatpush1.bf16.xpose.msra.mxu0 0
        %1074 = vmatprep.subr.bf16.mxu0 0
        %1075 = vmatpush1.bf16.xpose.msra.mxu0 0
        %1076 = vmatprep.subr.bf16.mxu0 0
        %1077 = vmatpush1.bf16.xpose.msra.mxu0 0
        %1078 = vmatprep.subr.bf16.mxu0 0
        %1079 = vmatpush1.bf16.xpose.msra.mxu0 0
        %1080 = vmatprep.subr.bf16.mxu0 0
        %1081 = vmatpush1.bf16.xpose.msra.mxu0 0
        %1082 = vmatprep.subr.bf16.mxu0 0
        %1083 = vmatpush1.bf16.xpose.msra.mxu0 0
        %1084 = vmatprep.subr.bf16.mxu0 0
        %1085 = vmatpush1.bf16.xpose.msra.mxu0 0
        %1086 = vmatprep.subr.bf16.mxu0 0
        %1087 = vmatpush1.bf16.xpose.msra.mxu0 0
        %1088 = vmatprep.subr.bf16.mxu0 0
        %1089 = vmatpush1.bf16.xpose.msra.mxu0 0
        %1090 = vmatprep.subr.bf16.mxu0 0
        %1091 = vmatpush1.bf16.xpose.msra.mxu0 0
        %1092 = vmatprep.subr.bf16.mxu0 0
        %1093 = vmatpush1.bf16.xpose.msra.mxu0 0
        %1094 = vmatprep.subr.bf16.mxu0 0
        %1095 = vmatpush1.bf16.xpose.msra.mxu0 0
        %1096 = vmatprep.subr.bf16.mxu0 0
        %1097 = vmatpush1.bf16.xpose.msra.mxu0 0
        %1098 = vmatprep.mubr.bf16.mxu0 0
        %1099 = vmatmul.mubr.bf16.gmra.mrb[0].mxu0 %v1061
        %v1100 = vpop.f32.mrb[0].mxu0
        %v1101 = vadd.f32 0.0, %v1100
        %v1102 = vpop.f32.mrb[0].mxu0
        %v1103 = vpop.f32.mrb[0].mxu0
        %v1104 = vadd.f32 0.0, %v1103
        %v1105 = vpop.f32.mrb[0].mxu0
        %1106 = vdwg.mxu0
        %v1107 = vmul.f32 %v1051, 0.25
        %v1108 = vmul.f32 %v1054, 0.25
        %v1109 = vmul.f32 %v1101, 0.25
        %v1110 = vmul.f32 %v1104, 0.25
        %v1112 = vlaneseq
        %v1113 = vshrl.u32 %v1112, 7
        %v1114 = vsub.s32 0, %v1113
        %v1115 = vrot.slane %v1003, %v1114
        %v1117 = vadd.f32 %v1107, %v1115
        %v1118 = vadd.f32 %v1108, %v1115
        %v1119 = vadd.f32 %v1109, %v1115
        %v1120 = vadd.f32 %v1110, %v1115
        %v1121 = vsel %vm1009, %v1117, -inf
        %1122 = vmax.xlane.f32.xlu0 %v1121
        %v1123 = vpop.xlane.xlu0 %1122
        %v1124 = vsel %vm1009, %v1118, -inf
        %1125 = vmax.xlane.f32.xlu0 %v1124
        %v1126 = vpop.xlane.xlu0 %1125
        %v1127 = vsel %vm1009, %v1119, -inf
        %1128 = vmax.xlane.f32.xlu0 %v1127
        %v1129 = vpop.xlane.xlu0 %1128
        %v1130 = vsel %vm1009, %v1120, -inf
        %1131 = vmax.xlane.f32.xlu0 %v1130
        %v1132 = vpop.xlane.xlu0 %1131
        %v1133 = vsub.f32 %v1117, %v1123
        %v1134 = vsub.f32 %v1118, %v1126
        %v1135 = vsub.f32 %v1119, %v1129
        %v1136 = vsub.f32 %v1120, %v1132
        %v1137 = vmul.f32 %v1133, 1.442695
        %v1138 = vpow.pop %v1137
        %v1139 = vmul.f32 %v1134, 1.442695
        %v1140 = vpow.pop %v1139
        %v1141 = vmul.f32 %v1135, 1.442695
        %v1142 = vpow.pop %v1141
        %v1143 = vmul.f32 %v1136, 1.442695
        %v1144 = vpow.pop %v1143
        %v1145 = vsel %vm1009, %v1138, 0.0
        %1146 = vadd.xlane.f32.xlu0 %v1145
        %v1147 = vpop.xlane.xlu0 %1146
        %v1148 = vsel %vm1009, %v1140, 0.0
        %1149 = vadd.xlane.f32.xlu0 %v1148
        %v1150 = vpop.xlane.xlu0 %1149
        %v1151 = vsel %vm1009, %v1142, 0.0
        %1152 = vadd.xlane.f32.xlu0 %v1151
        %v1153 = vpop.xlane.xlu0 %1152
        %v1154 = vsel %vm1009, %v1144, 0.0
        %1155 = vadd.xlane.f32.xlu0 %v1154
        %v1156 = vpop.xlane.xlu0 %1155
        %v1157 = vrcp.pop %v1147
        %v1158 = vrcp.pop %v1150
        %v1159 = vrcp.pop %v1153
        %v1160 = vrcp.pop %v1156
        %v1161 = vmul.f32 %v1138, %v1157
        %v1162 = vmul.f32 %v1140, %v1158
        %v1163 = vmul.f32 %v1142, %v1159
        %v1164 = vmul.f32 %v1144, %v1160
        %v1165 = vpack.c.bf16 %v1162, %v1161
        %v1166 = vpack.c.bf16 %v1164, %v1163
        %1167 = vrot.lane.b32.xlu0 %v1004, 64
        %v1168 = vpop.permute.xlu0 %1167
        %v1171 = vsel %vm1009, %v1165, 0
        %1173 = vmatprep.subr.bf16.mxu0 0
        %1174 = vmatpush1.bf16.msra.mxu0 %v1168
        %1175 = vmatprep.subr.bf16.mxu0 0
        %1176 = vmatpush1.bf16.msra.mxu0 0
        %1177 = vmatprep.subr.bf16.mxu0 0
        %1178 = vmatpush1.bf16.msra.mxu0 0
        %1179 = vmatprep.subr.bf16.mxu0 0
        %1180 = vmatpush1.bf16.msra.mxu0 0
        %1181 = vmatprep.subr.bf16.mxu0 0
        %1182 = vmatpush1.bf16.msra.mxu0 0
        %1183 = vmatprep.subr.bf16.mxu0 0
        %1184 = vmatpush1.bf16.msra.mxu0 0
        %1185 = vmatprep.subr.bf16.mxu0 0
        %1186 = vmatpush1.bf16.msra.mxu0 0
        %1187 = vmatprep.subr.bf16.mxu0 0
        %1188 = vmatpush1.bf16.msra.mxu0 0
        %1189 = vmatprep.subr.bf16.mxu0 0
        %1190 = vmatpush1.bf16.msra.mxu0 0
        %1191 = vmatprep.subr.bf16.mxu0 0
        %1192 = vmatpush1.bf16.msra.mxu0 0
        %1193 = vmatprep.subr.bf16.mxu0 0
        %1194 = vmatpush1.bf16.msra.mxu0 0
        %1195 = vmatprep.subr.bf16.mxu0 0
        %1196 = vmatpush1.bf16.msra.mxu0 0
        %1197 = vmatprep.subr.bf16.mxu0 0
        %1198 = vmatpush1.bf16.msra.mxu0 0
        %1199 = vmatprep.subr.bf16.mxu0 0
        %1200 = vmatpush1.bf16.msra.mxu0 0
        %1201 = vmatprep.subr.bf16.mxu0 0
        %1202 = vmatpush1.bf16.msra.mxu0 0
        %1203 = vmatprep.subr.bf16.mxu0 0
        %1204 = vmatpush1.bf16.msra.mxu0 0
        %1205 = vmatprep.mubr.bf16.mxu0 0
        %1206 = vmatmul.mubr.bf16.gmra.mrb[0].mxu0 %v1171
        %v1207 = vpop.f32.mrb[0].mxu0
        %v1208 = vadd.f32 0.0, %v1207
        %v1209 = vpop.f32.mrb[0].mxu0
        %v1210 = vpop.f32.mrb[0].mxu0
        %v1211 = vadd.f32 0.0, %v1210
        %v1212 = vpop.f32.mrb[0].mxu0
        %1213 = vdwg.mxu0
        %1214 = vrot.lane.b32.xlu0 %v1005, 64
        %v1215 = vpop.permute.xlu0 %1214
        %v1218 = vsel %vm1009, %v1166, 0
        %1220 = vmatprep.subr.bf16.mxu0 0
        %1221 = vmatpush1.bf16.msra.mxu0 %v1215
        %1222 = vmatprep.subr.bf16.mxu0 0
        %1223 = vmatpush1.bf16.msra.mxu0 0
        %1224 = vmatprep.subr.bf16.mxu0 0
        %1225 = vmatpush1.bf16.msra.mxu0 0
        %1226 = vmatprep.subr.bf16.mxu0 0
        %1227 = vmatpush1.bf16.msra.mxu0 0
        %1228 = vmatprep.subr.bf16.mxu0 0
        %1229 = vmatpush1.bf16.msra.mxu0 0
        %1230 = vmatprep.subr.bf16.mxu0 0
        %1231 = vmatpush1.bf16.msra.mxu0 0
        %1232 = vmatprep.subr.bf16.mxu0 0
        %1233 = vmatpush1.bf16.msra.mxu0 0
        %1234 = vmatprep.subr.bf16.mxu0 0
        %1235 = vmatpush1.bf16.msra.mxu0 0
        %1236 = vmatprep.subr.bf16.mxu0 0
        %1237 = vmatpush1.bf16.msra.mxu0 0
        %1238 = vmatprep.subr.bf16.mxu0 0
        %1239 = vmatpush1.bf16.msra.mxu0 0
        %1240 = vmatprep.subr.bf16.mxu0 0
        %1241 = vmatpush1.bf16.msra.mxu0 0
        %1242 = vmatprep.subr.bf16.mxu0 0
        %1243 = vmatpush1.bf16.msra.mxu0 0
        %1244 = vmatprep.subr.bf16.mxu0 0
        %1245 = vmatpush1.bf16.msra.mxu0 0
        %1246 = vmatprep.subr.bf16.mxu0 0
        %1247 = vmatpush1.bf16.msra.mxu0 0
        %1248 = vmatprep.subr.bf16.mxu0 0
        %1249 = vmatpush1.bf16.msra.mxu0 0
        %1250 = vmatprep.subr.bf16.mxu0 0
        %1251 = vmatpush1.bf16.msra.mxu0 0
        %1252 = vmatprep.mubr.bf16.mxu0 0
        %1253 = vmatmul.mubr.bf16.gmra.mrb[0].mxu0 %v1218
        %v1254 = vpop.f32.mrb[0].mxu0
        %v1255 = vadd.f32 0.0, %v1254
        %v1256 = vpop.f32.mrb[0].mxu0
        %v1257 = vpop.f32.mrb[0].mxu0
        %v1258 = vadd.f32 0.0, %v1257
        %v1259 = vpop.f32.mrb[0].mxu0
        %1260 = vdwg.mxu0
        %v1261 = vpack.c.bf16 %v1211, %v1208
        %v1262 = vpack.c.bf16 %v1258, %v1255
        %1263 = vst.msk [vmem:[#allocation4] sm:$0xff] %vm1009, %v1261
        %1264 = vst.msk [vmem:[#allocation4 + $0x8] sm:$0xff] %vm1009, %v1262
        %v1265 = vld [vmem:[#allocation3] sm:$0xff]
        %v1266 = vld [vmem:[#allocation3 + $0x8] sm:$0xff]
        %1268 = vrot.lane.b32.xlu0 %v1265, 112
        %v1269 = vpop.permute.xlu0 %1268
        %1270 = vrot.lane.b32.xlu0 %v1265, 80
        %v1271 = vpop.permute.xlu0 %1270
        %v1273 = vsel %vm1009, %v1269, 0
        %v1276 = vsel %vm1009, %v1271, 0
        %1278 = vmatprep.subr.bf16.mxu0 0
        %1279 = vmatpush1.bf16.xpose.msra.mxu0 %v1276
        %1280 = vmatprep.subr.bf16.mxu0 0
        %1281 = vmatpush1.bf16.xpose.msra.mxu0 0
        %1282 = vmatprep.subr.bf16.mxu0 0
        %1283 = vmatpush1.bf16.xpose.msra.mxu0 0
        %1284 = vmatprep.subr.bf16.mxu0 0
        %1285 = vmatpush1.bf16.xpose.msra.mxu0 0
        %1286 = vmatprep.subr.bf16.mxu0 0
        %1287 = vmatpush1.bf16.xpose.msra.mxu0 0
        %1288 = vmatprep.subr.bf16.mxu0 0
        %1289 = vmatpush1.bf16.xpose.msra.mxu0 0
        %1290 = vmatprep.subr.bf16.mxu0 0
        %1291 = vmatpush1.bf16.xpose.msra.mxu0 0
        %1292 = vmatprep.subr.bf16.mxu0 0
        %1293 = vmatpush1.bf16.xpose.msra.mxu0 0
        %1294 = vmatprep.subr.bf16.mxu0 0
        %1295 = vmatpush1.bf16.xpose.msra.mxu0 0
        %1296 = vmatprep.subr.bf16.mxu0 0
        %1297 = vmatpush1.bf16.xpose.msra.mxu0 0
        %1298 = vmatprep.subr.bf16.mxu0 0
        %1299 = vmatpush1.bf16.xpose.msra.mxu0 0
        %1300 = vmatprep.subr.bf16.mxu0 0
        %1301 = vmatpush1.bf16.xpose.msra.mxu0 0
        %1302 = vmatprep.subr.bf16.mxu0 0
        %1303 = vmatpush1.bf16.xpose.msra.mxu0 0
        %1304 = vmatprep.subr.bf16.mxu0 0
        %1305 = vmatpush1.bf16.xpose.msra.mxu0 0
        %1306 = vmatprep.subr.bf16.mxu0 0
        %1307 = vmatpush1.bf16.xpose.msra.mxu0 0
        %1308 = vmatprep.subr.bf16.mxu0 0
        %1309 = vmatpush1.bf16.xpose.msra.mxu0 0
        %1310 = vmatprep.mubr.bf16.mxu0 0
        %1311 = vmatmul.mubr.bf16.gmra.mrb[0].mxu0 %v1273
        %v1312 = vpop.f32.mrb[0].mxu0
        %v1313 = vadd.f32 0.0, %v1312
        %v1314 = vpop.f32.mrb[0].mxu0
        %v1315 = vpop.f32.mrb[0].mxu0
        %v1316 = vadd.f32 0.0, %v1315
        %v1317 = vpop.f32.mrb[0].mxu0
        %1318 = vdwg.mxu0
        %1320 = vrot.lane.b32.xlu0 %v1266, 112
        %v1321 = vpop.permute.xlu0 %1320
        %1322 = vrot.lane.b32.xlu0 %v1266, 80
        %v1323 = vpop.permute.xlu0 %1322
        %v1325 = vsel %vm1009, %v1321, 0
        %v1328 = vsel %vm1009, %v1323, 0
        %1330 = vmatprep.subr.bf16.mxu0 0
        %1331 = vmatpush1.bf16.xpose.msra.mxu0 %v1328
        %1332 = vmatprep.subr.bf16.mxu0 0
        %1333 = vmatpush1.bf16.xpose.msra.mxu0 0
        %1334 = vmatprep.subr.bf16.mxu0 0
        %1335 = vmatpush1.bf16.xpose.msra.mxu0 0
        %1336 = vmatprep.subr.bf16.mxu0 0
        %1337 = vmatpush1.bf16.xpose.msra.mxu0 0
        %1338 = vmatprep.subr.bf16.mxu0 0
        %1339 = vmatpush1.bf16.xpose.msra.mxu0 0
        %1340 = vmatprep.subr.bf16.mxu0 0
        %1341 = vmatpush1.bf16.xpose.msra.mxu0 0
        %1342 = vmatprep.subr.bf16.mxu0 0
        %1343 = vmatpush1.bf16.xpose.msra.mxu0 0
        %1344 = vmatprep.subr.bf16.mxu0 0
        %1345 = vmatpush1.bf16.xpose.msra.mxu0 0
        %1346 = vmatprep.subr.bf16.mxu0 0
        %1347 = vmatpush1.bf16.xpose.msra.mxu0 0
        %1348 = vmatprep.subr.bf16.mxu0 0
        %1349 = vmatpush1.bf16.xpose.msra.mxu0 0
        %1350 = vmatprep.subr.bf16.mxu0 0
        %1351 = vmatpush1.bf16.xpose.msra.mxu0 0
        %1352 = vmatprep.subr.bf16.mxu0 0
        %1353 = vmatpush1.bf16.xpose.msra.mxu0 0
        %1354 = vmatprep.subr.bf16.mxu0 0
        %1355 = vmatpush1.bf16.xpose.msra.mxu0 0
        %1356 = vmatprep.subr.bf16.mxu0 0
        %1357 = vmatpush1.bf16.xpose.msra.mxu0 0
        %1358 = vmatprep.subr.bf16.mxu0 0
        %1359 = vmatpush1.bf16.xpose.msra.mxu0 0
        %1360 = vmatprep.subr.bf16.mxu0 0
        %1361 = vmatpush1.bf16.xpose.msra.mxu0 0
        %1362 = vmatprep.mubr.bf16.mxu0 0
        %1363 = vmatmul.mubr.bf16.gmra.mrb[0].mxu0 %v1325
        %v1364 = vpop.f32.mrb[0].mxu0
        %v1365 = vadd.f32 0.0, %v1364
        %v1366 = vpop.f32.mrb[0].mxu0
        %v1367 = vpop.f32.mrb[0].mxu0
        %v1368 = vadd.f32 0.0, %v1367
        %v1369 = vpop.f32.mrb[0].mxu0
        %1370 = vdwg.mxu0
        %v1371 = vmul.f32 %v1313, 0.25
        %v1372 = vmul.f32 %v1316, 0.25
        %v1373 = vmul.f32 %v1365, 0.25
        %v1374 = vmul.f32 %v1368, 0.25
        %v1375 = vadd.f32 %v1371, %v1115
        %v1376 = vadd.f32 %v1372, %v1115
        %v1377 = vadd.f32 %v1373, %v1115
        %v1378 = vadd.f32 %v1374, %v1115
        %v1379 = vsel %vm1009, %v1375, -inf
        %1380 = vmax.xlane.f32.xlu0 %v1379
        %v1381 = vpop.xlane.xlu0 %1380
        %v1382 = vsel %vm1009, %v1376, -inf
        %1383 = vmax.xlane.f32.xlu0 %v1382
        %v1384 = vpop.xlane.xlu0 %1383
        %v1385 = vsel %vm1009, %v1377, -inf
        %1386 = vmax.xlane.f32.xlu0 %v1385
        %v1387 = vpop.xlane.xlu0 %1386
        %v1388 = vsel %vm1009, %v1378, -inf
        %1389 = vmax.xlane.f32.xlu0 %v1388
        %v1390 = vpop.xlane.xlu0 %1389
        %v1391 = vsub.f32 %v1375, %v1381
        %v1392 = vsub.f32 %v1376, %v1384
        %v1393 = vsub.f32 %v1377, %v1387
        %v1394 = vsub.f32 %v1378, %v1390
        %v1395 = vmul.f32 %v1391, 1.442695
        %v1396 = vpow.pop %v1395
        %v1397 = vmul.f32 %v1392, 1.442695
        %v1398 = vpow.pop %v1397
        %v1399 = vmul.f32 %v1393, 1.442695
        %v1400 = vpow.pop %v1399
        %v1401 = vmul.f32 %v1394, 1.442695
        %v1402 = vpow.pop %v1401
        %v1403 = vsel %vm1009, %v1396, 0.0
        %1404 = vadd.xlane.f32.xlu0 %v1403
        %v1405 = vpop.xlane.xlu0 %1404
        %v1406 = vsel %vm1009, %v1398, 0.0
        %1407 = vadd.xlane.f32.xlu0 %v1406
        %v1408 = vpop.xlane.xlu0 %1407
        %v1409 = vsel %vm1009, %v1400, 0.0
        %1410 = vadd.xlane.f32.xlu0 %v1409
        %v1411 = vpop.xlane.xlu0 %1410
        %v1412 = vsel %vm1009, %v1402, 0.0
        %1413 = vadd.xlane.f32.xlu0 %v1412
        %v1414 = vpop.xlane.xlu0 %1413
        %v1415 = vrcp.pop %v1405
        %v1416 = vrcp.pop %v1408
        %v1417 = vrcp.pop %v1411
        %v1418 = vrcp.pop %v1414
        %v1419 = vmul.f32 %v1396, %v1415
        %v1420 = vmul.f32 %v1398, %v1416
        %v1421 = vmul.f32 %v1400, %v1417
        %v1422 = vmul.f32 %v1402, %v1418
        %v1423 = vpack.c.bf16 %v1420, %v1419
        %v1424 = vpack.c.bf16 %v1422, %v1421
        %1425 = vrot.lane.b32.xlu0 %v1265, 48
        %v1426 = vpop.permute.xlu0 %1425
        %v1429 = vsel %vm1009, %v1423, 0
        %1431 = vmatprep.subr.bf16.mxu0 0
        %1432 = vmatpush1.bf16.msra.mxu0 %v1426
        %1433 = vmatprep.subr.bf16.mxu0 0
        %1434 = vmatpush1.bf16.msra.mxu0 0
        %1435 = vmatprep.subr.bf16.mxu0 0
        %1436 = vmatpush1.bf16.msra.mxu0 0
        %1437 = vmatprep.subr.bf16.mxu0 0
        %1438 = vmatpush1.bf16.msra.mxu0 0
        %1439 = vmatprep.subr.bf16.mxu0 0
        %1440 = vmatpush1.bf16.msra.mxu0 0
        %1441 = vmatprep.subr.bf16.mxu0 0
        %1442 = vmatpush1.bf16.msra.mxu0 0
        %1443 = vmatprep.subr.bf16.mxu0 0
        %1444 = vmatpush1.bf16.msra.mxu0 0
        %1445 = vmatprep.subr.bf16.mxu0 0
        %1446 = vmatpush1.bf16.msra.mxu0 0
        %1447 = vmatprep.subr.bf16.mxu0 0
        %1448 = vmatpush1.bf16.msra.mxu0 0
        %1449 = vmatprep.subr.bf16.mxu0 0
        %1450 = vmatpush1.bf16.msra.mxu0 0
        %1451 = vmatprep.subr.bf16.mxu0 0
        %1452 = vmatpush1.bf16.msra.mxu0 0
        %1453 = vmatprep.subr.bf16.mxu0 0
        %1454 = vmatpush1.bf16.msra.mxu0 0
        %1455 = vmatprep.subr.bf16.mxu0 0
        %1456 = vmatpush1.bf16.msra.mxu0 0
        %1457 = vmatprep.subr.bf16.mxu0 0
        %1458 = vmatpush1.bf16.msra.mxu0 0
        %1459 = vmatprep.subr.bf16.mxu0 0
        %1460 = vmatpush1.bf16.msra.mxu0 0
        %1461 = vmatprep.subr.bf16.mxu0 0
        %1462 = vmatpush1.bf16.msra.mxu0 0
        %1463 = vmatprep.mubr.bf16.mxu0 0
        %1464 = vmatmul.mubr.bf16.gmra.mrb[0].mxu0 %v1429
        %v1465 = vpop.f32.mrb[0].mxu0
        %v1466 = vadd.f32 0.0, %v1465
        %v1467 = vpop.f32.mrb[0].mxu0
        %v1468 = vpop.f32.mrb[0].mxu0
        %v1469 = vadd.f32 0.0, %v1468
        %v1470 = vpop.f32.mrb[0].mxu0
        %1471 = vdwg.mxu0
        %1472 = vrot.lane.b32.xlu0 %v1266, 48
        %v1473 = vpop.permute.xlu0 %1472
        %v1476 = vsel %vm1009, %v1424, 0
        %1478 = vmatprep.subr.bf16.mxu0 0
        %1479 = vmatpush1.bf16.msra.mxu0 %v1473
        %1480 = vmatprep.subr.bf16.mxu0 0
        %1481 = vmatpush1.bf16.msra.mxu0 0
        %1482 = vmatprep.subr.bf16.mxu0 0
        %1483 = vmatpush1.bf16.msra.mxu0 0
        %1484 = vmatprep.subr.bf16.mxu0 0
        %1485 = vmatpush1.bf16.msra.mxu0 0
        %1486 = vmatprep.subr.bf16.mxu0 0
        %1487 = vmatpush1.bf16.msra.mxu0 0
        %1488 = vmatprep.subr.bf16.mxu0 0
        %1489 = vmatpush1.bf16.msra.mxu0 0
        %1490 = vmatprep.subr.bf16.mxu0 0
        %1491 = vmatpush1.bf16.msra.mxu0 0
        %1492 = vmatprep.subr.bf16.mxu0 0
        %1493 = vmatpush1.bf16.msra.mxu0 0
        %1494 = vmatprep.subr.bf16.mxu0 0
        %1495 = vmatpush1.bf16.msra.mxu0 0
        %1496 = vmatprep.subr.bf16.mxu0 0
        %1497 = vmatpush1.bf16.msra.mxu0 0
        %1498 = vmatprep.subr.bf16.mxu0 0
        %1499 = vmatpush1.bf16.msra.mxu0 0
        %1500 = vmatprep.subr.bf16.mxu0 0
        %1501 = vmatpush1.bf16.msra.mxu0 0
        %1502 = vmatprep.subr.bf16.mxu0 0
        %1503 = vmatpush1.bf16.msra.mxu0 0
        %1504 = vmatprep.subr.bf16.mxu0 0
        %1505 = vmatpush1.bf16.msra.mxu0 0
        %1506 = vmatprep.subr.bf16.mxu0 0
        %1507 = vmatpush1.bf16.msra.mxu0 0
        %1508 = vmatprep.subr.bf16.mxu0 0
        %1509 = vmatpush1.bf16.msra.mxu0 0
        %1510 = vmatprep.mubr.bf16.mxu0 0
        %1511 = vmatmul.mubr.bf16.gmra.mrb[0].mxu0 %v1476
        %v1512 = vpop.f32.mrb[0].mxu0
        %v1513 = vadd.f32 0.0, %v1512
        %v1514 = vpop.f32.mrb[0].mxu0
        %v1515 = vpop.f32.mrb[0].mxu0
        %v1516 = vadd.f32 0.0, %v1515
        %v1517 = vpop.f32.mrb[0].mxu0
        %1518 = vdwg.mxu0
        %v1519 = vpack.c.bf16 %v1469, %v1466
        %v1520 = vpack.c.bf16 %v1516, %v1513
        %1523 = vrot.lane.b32.xlu0 %v1519, 16
        %v1524 = vpop.permute.xlu0 %1523
        %1525 = vrot.lane.b32.xlu0 %v1520, 16
        %v1526 = vpop.permute.xlu0 %1525
        %vm1529 = vcmask 261248
        %1530 = vst.msk [vmem:[#allocation4] sm:$0xff] %vm1529, %v1524
        %1531 = vst.msk [vmem:[#allocation4 + $0x8] sm:$0xff] %vm1529, %v1526
        %v1532 = vld [vmem:[#allocation4] sm:$0xff]
        %v1533 = vld [vmem:[#allocation4 + $0x8] sm:$0xff]
        %v1534 = vld [vmem:[%s686] sm:$0xf]
        %v1535 = vld [vmem:[%s686 + $0x4] sm:$0xf]
        %v1536 = vld [vmem:[%s686 + $0x8] sm:$0xf]
        %v1537 = vld [vmem:[%s686 + $0xc] sm:$0xf]
        %v1542 = vunpack.c.l.b16 %v1534
        %v1543 = vunpack.c.l.b16 %v1535
        %v1544 = vunpack.c.l.b16 %v1536
        %v1545 = vunpack.c.l.b16 %v1537
        %v1546 = vpack.c.b16 %v1543, %v1542
        %v1547 = vpack.c.b16 %v1545, %v1544
        %v1551 = vsel %vm851, %v1532, 0
        %v1554 = vsel %vm851, %v1533, 0
        %1556 = vmatprep.subr.bf16.mxu0 0
        %1557 = vmatpush1.bf16.msra.mxu0 %v1546
        %1558 = vmatprep.subr.bf16.mxu0 0
        %1559 = vmatpush1.bf16.msra.mxu0 %v1547
        %1560 = vmatprep.subr.bf16.mxu0 0
        %1561 = vmatpush1.bf16.msra.mxu0 0
        %1562 = vmatprep.subr.bf16.mxu0 0
        %1563 = vmatpush1.bf16.msra.mxu0 0
        %1564 = vmatprep.subr.bf16.mxu0 0
        %1565 = vmatpush1.bf16.msra.mxu0 0
        %1566 = vmatprep.subr.bf16.mxu0 0
        %1567 = vmatpush1.bf16.msra.mxu0 0
        %1568 = vmatprep.subr.bf16.mxu0 0
        %1569 = vmatpush1.bf16.msra.mxu0 0
        %1570 = vmatprep.subr.bf16.mxu0 0
        %1571 = vmatpush1.bf16.msra.mxu0 0
        %1572 = vmatprep.subr.bf16.mxu0 0
        %1573 = vmatpush1.bf16.msra.mxu0 0
        %1574 = vmatprep.subr.bf16.mxu0 0
        %1575 = vmatpush1.bf16.msra.mxu0 0
        %1576 = vmatprep.subr.bf16.mxu0 0
        %1577 = vmatpush1.bf16.msra.mxu0 0
        %1578 = vmatprep.subr.bf16.mxu0 0
        %1579 = vmatpush1.bf16.msra.mxu0 0
        %1580 = vmatprep.subr.bf16.mxu0 0
        %1581 = vmatpush1.bf16.msra.mxu0 0
        %1582 = vmatprep.subr.bf16.mxu0 0
        %1583 = vmatpush1.bf16.msra.mxu0 0
        %1584 = vmatprep.subr.bf16.mxu0 0
        %1585 = vmatpush1.bf16.msra.mxu0 0
        %1586 = vmatprep.subr.bf16.mxu0 0
        %1587 = vmatpush1.bf16.msra.mxu0 0
        %1588 = vmatprep.mubr.bf16.mxu0 0
        %1589 = vmatmul.mubr.bf16.gmra.mrb[0].mxu0 %v1551
        %v1590 = vpop.f32.mrb[0].mxu0
        %v1591 = vadd.f32 0.0, %v1590
        %v1592 = vpop.f32.mrb[0].mxu0
        %v1593 = vpop.f32.mrb[0].mxu0
        %v1594 = vadd.f32 0.0, %v1593
        %v1595 = vpop.f32.mrb[0].mxu0
        %1596 = vmatprep.mubr.bf16.mxu0 0
        %1597 = vmatmul.mubr.bf16.gmra.mrb[0].mxu0 %v1554
        %v1598 = vpop.f32.mrb[0].mxu0
        %v1599 = vadd.f32 0.0, %v1598
        %v1600 = vpop.f32.mrb[0].mxu0
        %v1601 = vpop.f32.mrb[0].mxu0
        %v1602 = vadd.f32 0.0, %v1601
        %v1603 = vpop.f32.mrb[0].mxu0
        %1604 = vdwg.mxu0
        %v1605 = vadd.f32 %v845, %v1591
        %v1606 = vadd.f32 %v846, %v1594
        %v1607 = vadd.f32 %v847, %v1599
        %v1608 = vadd.f32 %v848, %v1602
        %v1609 = vld [vmem:[%s694] sm:$0x1]
        %v1611 = vlaneseq
        %v1612 = vshrl.u32 %v1611, 7
        %v1613 = vsub.s32 0, %v1612
        %v1614 = vrot.slane %v1609, %v1613
        %v1616 = vadd.f32 %v1605, %v1614
        %v1617 = vadd.f32 %v1606, %v1614
        %v1618 = vadd.f32 %v1607, %v1614
        %v1619 = vadd.f32 %v1608, %v1614
        %v1620 = vld [vmem:[%s702] sm:$0x1]
        %v1621 = vld [vmem:[%s710] sm:$0x1]
        %v1622 = vsel %vm851, %v1616, 0.0
        %1623 = vadd.xlane.f32.xlu0 %v1622
        %v1624 = vpop.xlane.xlu0 %1623
        %v1625 = vsel %vm851, %v1617, 0.0
        %1626 = vadd.xlane.f32.xlu0 %v1625
        %v1627 = vpop.xlane.xlu0 %1626
        %v1628 = vsel %vm851, %v1618, 0.0
        %1629 = vadd.xlane.f32.xlu0 %v1628
        %v1630 = vpop.xlane.xlu0 %1629
        %v1631 = vsel %vm851, %v1619, 0.0
        %1632 = vadd.xlane.f32.xlu0 %v1631
        %v1633 = vpop.xlane.xlu0 %1632
        %v1634 = vmul.f32 %v1624, %v864
        %v1635 = vmul.f32 %v1627, %v864
        %v1636 = vmul.f32 %v1630, %v864
        %v1637 = vmul.f32 %v1633, %v864
        %v1638 = vsub.f32 %v1616, %v1634
        %v1639 = vsub.f32 %v1617, %v1635
        %v1640 = vsub.f32 %v1618, %v1636
        %v1641 = vsub.f32 %v1619, %v1637
        %v1642 = vmul.f32 %v1638, %v1638
        %v1643 = vmul.f32 %v1639, %v1639
        %v1644 = vmul.f32 %v1640, %v1640
        %v1645 = vmul.f32 %v1641, %v1641
        %v1646 = vsel %vm851, %v1642, 0.0
        %1647 = vadd.xlane.f32.xlu0 %v1646
        %v1648 = vpop.xlane.xlu0 %1647
        %v1649 = vsel %vm851, %v1643, 0.0
        %1650 = vadd.xlane.f32.xlu0 %v1649
        %v1651 = vpop.xlane.xlu0 %1650
        %v1652 = vsel %vm851, %v1644, 0.0
        %1653 = vadd.xlane.f32.xlu0 %v1652
        %v1654 = vpop.xlane.xlu0 %1653
        %v1655 = vsel %vm851, %v1645, 0.0
        %1656 = vadd.xlane.f32.xlu0 %v1655
        %v1657 = vpop.xlane.xlu0 %1656
        %v1658 = vmul.f32 %v1648, %v864
        %v1659 = vmul.f32 %v1651, %v864
        %v1660 = vmul.f32 %v1654, %v864
        %v1661 = vmul.f32 %v1657, %v864
        %v1662 = vadd.f32 %v1658, 1e-05
        %v1663 = vadd.f32 %v1659, 1e-05
        %v1664 = vadd.f32 %v1660, 1e-05
        %v1665 = vadd.f32 %v1661, 1e-05
        %v1666 = vrsqrt.pop %v1662
        %v1667 = vrsqrt.pop %v1663
        %v1668 = vrsqrt.pop %v1664
        %v1669 = vrsqrt.pop %v1665
        %v1670 = vmul.f32 %v1638, %v1666
        %v1671 = vmul.f32 %v1639, %v1667
        %v1672 = vmul.f32 %v1640, %v1668
        %v1673 = vmul.f32 %v1641, %v1669
        %v1675 = vlaneseq
        %v1676 = vshrl.u32 %v1675, 7
        %v1677 = vsub.s32 0, %v1676
        %v1678 = vrot.slane %v1620, %v1677
        %v1680 = vmul.f32 %v1670, %v1678
        %v1681 = vmul.f32 %v1671, %v1678
        %v1682 = vmul.f32 %v1672, %v1678
        %v1683 = vmul.f32 %v1673, %v1678
        %v1685 = vlaneseq
        %v1686 = vshrl.u32 %v1685, 7
        %v1687 = vsub.s32 0, %v1686
        %v1688 = vrot.slane %v1621, %v1687
        %v1690 = vadd.f32 %v1680, %v1688
        %v1691 = vadd.f32 %v1681, %v1688
        %v1692 = vadd.f32 %v1682, %v1688
        %v1693 = vadd.f32 %v1683, %v1688
        %v1694 = vpack.c.bf16 %v1691, %v1690
        %v1695 = vpack.c.bf16 %v1693, %v1692
        %v1696 = vld [vmem:[%s719] sm:$0xf]
        %v1697 = vld [vmem:[%s719 + $0x4] sm:$0xf]
        %v1698 = vld [vmem:[%s719 + $0x8] sm:$0xf]
        %v1699 = vld [vmem:[%s719 + $0xc] sm:$0xf]
        %v1700 = vld [vmem:[%s727] sm:$0x1]
        %v1702 = vlaneseq
        %v1703 = vshrl.u32 %v1702, 7
        %v1704 = vsub.s32 0, %v1703
        %v1705 = vrot.slane %v1700, %v1704
        %v1711 = vunpack.c.l.b16 %v1696
        %v1712 = vunpack.c.l.b16 %v1697
        %v1713 = vunpack.c.l.b16 %v1698
        %v1714 = vunpack.c.l.b16 %v1699
        %v1715 = vpack.c.b16 %v1712, %v1711
        %v1716 = vpack.c.b16 %v1714, %v1713
        %v1720 = vsel %vm851, %v1694, 0
        %v1723 = vsel %vm851, %v1695, 0
        %1725 = vmatprep.subr.bf16.mxu0 0
        %1726 = vmatpush1.bf16.msra.mxu0 %v1715
        %1727 = vmatprep.subr.bf16.mxu0 0
        %1728 = vmatpush1.bf16.msra.mxu0 %v1716
        %1729 = vmatprep.subr.bf16.mxu0 0
        %1730 = vmatpush1.bf16.msra.mxu0 0
        %1731 = vmatprep.subr.bf16.mxu0 0
        %1732 = vmatpush1.bf16.msra.mxu0 0
        %1733 = vmatprep.subr.bf16.mxu0 0
        %1734 = vmatpush1.bf16.msra.mxu0 0
        %1735 = vmatprep.subr.bf16.mxu0 0
        %1736 = vmatpush1.bf16.msra.mxu0 0
        %1737 = vmatprep.subr.bf16.mxu0 0
        %1738 = vmatpush1.bf16.msra.mxu0 0
        %1739 = vmatprep.subr.bf16.mxu0 0
        %1740 = vmatpush1.bf16.msra.mxu0 0
        %1741 = vmatprep.subr.bf16.mxu0 0
        %1742 = vmatpush1.bf16.msra.mxu0 0
        %1743 = vmatprep.subr.bf16.mxu0 0
        %1744 = vmatpush1.bf16.msra.mxu0 0
        %1745 = vmatprep.subr.bf16.mxu0 0
        %1746 = vmatpush1.bf16.msra.mxu0 0
        %1747 = vmatprep.subr.bf16.mxu0 0
        %1748 = vmatpush1.bf16.msra.mxu0 0
        %1749 = vmatprep.subr.bf16.mxu0 0
        %1750 = vmatpush1.bf16.msra.mxu0 0
        %1751 = vmatprep.subr.bf16.mxu0 0
        %1752 = vmatpush1.bf16.msra.mxu0 0
        %1753 = vmatprep.subr.bf16.mxu0 0
        %1754 = vmatpush1.bf16.msra.mxu0 0
        %1755 = vmatprep.subr.bf16.mxu0 0
        %1756 = vmatpush1.bf16.msra.mxu0 0
        %1757 = vmatprep.mubr.bf16.mxu0 0
        %1758 = vmatmul.mubr.bf16.gmra.mrb[0].mxu0 %v1720
        %v1759 = vpop.f32.mrb[0].mxu0
        %v1760 = vadd.f32 %v1705, %v1759
        %v1761 = vpop.f32.mrb[0].mxu0
        %v1762 = vpop.f32.mrb[0].mxu0
        %v1763 = vadd.f32 %v1705, %v1762
        %v1764 = vpop.f32.mrb[0].mxu0
        %1765 = vmatprep.mubr.bf16.mxu0 0
        %1766 = vmatmul.mubr.bf16.gmra.mrb[0].mxu0 %v1723
        %v1767 = vpop.f32.mrb[0].mxu0
        %v1768 = vadd.f32 %v1705, %v1767
        %v1769 = vpop.f32.mrb[0].mxu0
        %v1770 = vpop.f32.mrb[0].mxu0
        %v1771 = vadd.f32 %v1705, %v1770
        %v1772 = vpop.f32.mrb[0].mxu0
        %1773 = vdwg.mxu0
        %v1774 = vmul.f32 %v1760, %v1760
        %v1775 = vmul.f32 %v1763, %v1763
        %v1776 = vmul.f32 %v1768, %v1768
        %v1777 = vmul.f32 %v1771, %v1771
        %v1778 = vmul.f32 %v1760, %v1774
        %v1779 = vmul.f32 %v1763, %v1775
        %v1780 = vmul.f32 %v1768, %v1776
        %v1781 = vmul.f32 %v1771, %v1777
        %v1782 = vmul.f32 %v1778, 0.044715
        %v1783 = vmul.f32 %v1779, 0.044715
        %v1784 = vmul.f32 %v1780, 0.044715
        %v1785 = vmul.f32 %v1781, 0.044715
        %v1786 = vadd.f32 %v1760, %v1782
        %v1787 = vadd.f32 %v1763, %v1783
        %v1788 = vadd.f32 %v1768, %v1784
        %v1789 = vadd.f32 %v1771, %v1785
        %v1790 = vmul.f32 %v1786, 0.7978846
        %v1791 = vmul.f32 %v1787, 0.7978846
        %v1792 = vmul.f32 %v1788, 0.7978846
        %v1793 = vmul.f32 %v1789, 0.7978846
        %v1794 = vtanh.pop %v1790
        %v1795 = vtanh.pop %v1791
        %v1796 = vtanh.pop %v1792
        %v1797 = vtanh.pop %v1793
        %v1798 = vadd.f32 %v1794, 1.0
        %v1799 = vadd.f32 %v1795, 1.0
        %v1800 = vadd.f32 %v1796, 1.0
        %v1801 = vadd.f32 %v1797, 1.0
        %v1802 = vmul.f32 %v1798, 0.5
        %v1803 = vmul.f32 %v1799, 0.5
        %v1804 = vmul.f32 %v1800, 0.5
        %v1805 = vmul.f32 %v1801, 0.5
        %v1806 = vmul.f32 %v1760, %v1802
        %v1807 = vmul.f32 %v1763, %v1803
        %v1808 = vmul.f32 %v1768, %v1804
        %v1809 = vmul.f32 %v1771, %v1805
        %v1810 = vpack.c.bf16 %v1807, %v1806
        %v1811 = vpack.c.bf16 %v1809, %v1808
        %v1812 = vld [vmem:[%s736] sm:$0xf]
        %v1813 = vld [vmem:[%s736 + $0x4] sm:$0xf]
        %v1814 = vld [vmem:[%s736 + $0x8] sm:$0xf]
        %v1815 = vld [vmem:[%s736 + $0xc] sm:$0xf]
        %v1816 = vld [vmem:[%s736 + $0x10] sm:$0xf]
        %v1817 = vld [vmem:[%s736 + $0x14] sm:$0xf]
        %v1818 = vld [vmem:[%s736 + $0x18] sm:$0xf]
        %v1819 = vld [vmem:[%s736 + $0x1c] sm:$0xf]
        %v1820 = vld [vmem:[%s736 + $0x20] sm:$0xf]
        %v1821 = vld [vmem:[%s736 + $0x24] sm:$0xf]
        %v1822 = vld [vmem:[%s736 + $0x28] sm:$0xf]
        %v1823 = vld [vmem:[%s736 + $0x2c] sm:$0xf]
        %v1824 = vld [vmem:[%s736 + $0x30] sm:$0xf]
        %v1825 = vld [vmem:[%s736 + $0x34] sm:$0xf]
        %v1826 = vld [vmem:[%s736 + $0x38] sm:$0xf]
        %v1827 = vld [vmem:[%s736 + $0x3c] sm:$0xf]
        %v1844 = vunpack.c.l.b16 %v1812
        %v1845 = vunpack.c.l.b16 %v1813
        %v1846 = vunpack.c.l.b16 %v1814
        %v1847 = vunpack.c.l.b16 %v1815
        %v1848 = vunpack.c.l.b16 %v1816
        %v1849 = vunpack.c.l.b16 %v1817
        %v1850 = vunpack.c.l.b16 %v1818
        %v1851 = vunpack.c.l.b16 %v1819
        %v1852 = vunpack.c.l.b16 %v1820
        %v1853 = vunpack.c.l.b16 %v1821
        %v1854 = vunpack.c.l.b16 %v1822
        %v1855 = vunpack.c.l.b16 %v1823
        %v1856 = vunpack.c.l.b16 %v1824
        %v1857 = vunpack.c.l.b16 %v1825
        %v1858 = vunpack.c.l.b16 %v1826
        %v1859 = vunpack.c.l.b16 %v1827
        %v1860 = vpack.c.b16 %v1845, %v1844
        %v1861 = vpack.c.b16 %v1847, %v1846
        %v1862 = vpack.c.b16 %v1849, %v1848
        %v1863 = vpack.c.b16 %v1851, %v1850
        %v1864 = vpack.c.b16 %v1853, %v1852
        %v1865 = vpack.c.b16 %v1855, %v1854
        %v1866 = vpack.c.b16 %v1857, %v1856
        %v1867 = vpack.c.b16 %v1859, %v1858
        %1876 = vmatprep.subr.bf16.mxu0 0
        %1877 = vmatpush1.bf16.msra.mxu0 %v1860
        %1878 = vmatprep.subr.bf16.mxu0 0
        %1879 = vmatpush1.bf16.msra.mxu0 %v1861
        %1880 = vmatprep.subr.bf16.mxu0 0
        %1881 = vmatpush1.bf16.msra.mxu0 %v1862
        %1882 = vmatprep.subr.bf16.mxu0 0
        %1883 = vmatpush1.bf16.msra.mxu0 %v1863
        %1884 = vmatprep.subr.bf16.mxu0 0
        %1885 = vmatpush1.bf16.msra.mxu0 %v1864
        %1886 = vmatprep.subr.bf16.mxu0 0
        %1887 = vmatpush1.bf16.msra.mxu0 %v1865
        %1888 = vmatprep.subr.bf16.mxu0 0
        %1889 = vmatpush1.bf16.msra.mxu0 %v1866
        %1890 = vmatprep.subr.bf16.mxu0 0
        %1891 = vmatpush1.bf16.msra.mxu0 %v1867
        %1892 = vmatprep.subr.bf16.mxu0 0
        %1893 = vmatpush1.bf16.msra.mxu0 0
        %1894 = vmatprep.subr.bf16.mxu0 0
        %1895 = vmatpush1.bf16.msra.mxu0 0
        %1896 = vmatprep.subr.bf16.mxu0 0
        %1897 = vmatpush1.bf16.msra.mxu0 0
        %1898 = vmatprep.subr.bf16.mxu0 0
        %1899 = vmatpush1.bf16.msra.mxu0 0
        %1900 = vmatprep.subr.bf16.mxu0 0
        %1901 = vmatpush1.bf16.msra.mxu0 0
        %1902 = vmatprep.subr.bf16.mxu0 0
        %1903 = vmatpush1.bf16.msra.mxu0 0
        %1904 = vmatprep.subr.bf16.mxu0 0
        %1905 = vmatpush1.bf16.msra.mxu0 0
        %1906 = vmatprep.subr.bf16.mxu0 0
        %1907 = vmatpush1.bf16.msra.mxu0 0
        %1908 = vmatprep.mubr.bf16.mxu0 0
        %1909 = vmatmul.mubr.bf16.gmra.mrb[0].mxu0 %v1810
        %v1910 = vpop.f32.mrb[0].mxu0
        %v1911 = vadd.f32 0.0, %v1910
        %v1912 = vpop.f32.mrb[0].mxu0
        %v1913 = vpop.f32.mrb[0].mxu0
        %v1914 = vadd.f32 0.0, %v1913
        %v1915 = vpop.f32.mrb[0].mxu0
        %1916 = vmatprep.mubr.bf16.mxu0 0
        %1917 = vmatmul.mubr.bf16.gmra.mrb[0].mxu0 %v1811
        %v1918 = vpop.f32.mrb[0].mxu0
        %v1919 = vadd.f32 0.0, %v1918
        %v1920 = vpop.f32.mrb[0].mxu0
        %v1921 = vpop.f32.mrb[0].mxu0
        %v1922 = vadd.f32 0.0, %v1921
        %v1923 = vpop.f32.mrb[0].mxu0
        %1924 = vdwg.mxu0
        %v1925 = vadd.f32 %v1616, %v1911
        %v1926 = vadd.f32 %v1617, %v1914
        %v1927 = vadd.f32 %v1618, %v1919
        %v1928 = vadd.f32 %v1619, %v1922
        %v1929 = vld [vmem:[%s744] sm:$0x1]
        %v1931 = vlaneseq
        %v1932 = vshrl.u32 %v1931, 7
        %v1933 = vsub.s32 0, %v1932
        %v1934 = vrot.slane %v1929, %v1933
        %v1936 = vadd.f32 %v1925, %v1934
        %v1937 = vadd.f32 %v1926, %v1934
        %v1938 = vadd.f32 %v1927, %v1934
        %v1939 = vadd.f32 %v1928, %v1934
        %1940 = vst.msk [vmem:[#allocation2] sm:$0xff] %vm851, %v1936
        %1941 = vst.msk [vmem:[#allocation2 + $0x8] sm:$0xff] %vm851, %v1937
        %1942 = vst.msk [vmem:[#allocation2 + $0x10] sm:$0xff] %vm851, %v1938
        %1943 = vst.msk [vmem:[#allocation2 + $0x18] sm:$0xff] %vm851, %v1939
        %p1944 = scmp.eq.s32.totalorder %s32, 1
        // Predicated region
        $region129: #{tpu_custom_call.1} parent=71 // pred_check
          %p1945 = pneg %p1944
        $region130: #{tpu_custom_call.1} parent=71 // pred_check_branch
          %1947 = sbr.rel (%p1945) target = $region132
        $region131: #{tpu_custom_call.1} parent=71 // pred_region
          %v1948 = vpack.c.bf16 %v1937, %v1936
          %v1949 = vpack.c.bf16 %v1939, %v1938
          %v1952 = vunpack.c.l.b16 %v1948
          %v1953 = vunpack.c.h.b16 %v1948
          %v1954 = vunpack.c.l.b16 %v1949
          %v1955 = vunpack.c.h.b16 %v1949
          %v1956 = vpack.c.b16 %v1952, %v1952
          %v1957 = vpack.c.b16 %v1953, %v1953
          %v1958 = vpack.c.b16 %v1954, %v1954
          %v1959 = vpack.c.b16 %v1955, %v1955
          %vm1964 = vcmask 257024
          %1965 = vst.msk [vmem:[#allocation21] sm:$0xf] %vm1964, %v1956
          %1966 = vst.msk [vmem:[#allocation21 + $0x4] sm:$0xf] %vm1964, %v1957
          %1967 = vst.msk [vmem:[#allocation21 + $0x8] sm:$0xf] %vm1964, %v1958
          %1968 = vst.msk [vmem:[#allocation21 + $0xc] sm:$0xf] %vm1964, %v1959
        $region132: #{tpu_custom_call.1} parent=71 // pred_fallthru
          _
        // Predicated region
        $region133: #{tpu_custom_call.1} parent=71 // pred_check
          %p1969 = pneg %p390
        $region134: #{tpu_custom_call.1} parent=71 // pred_check_branch
          %1971 = sbr.rel (%p1969) target = $region136
        $region135: #{tpu_custom_call.1} parent=71 // pred_region
          %s1972 = smul.u32 4, %s31
          %s1974 = ssub.s32 256, 256
          %1975 = vsyncadd [#allocation7], %s1974
          %s1976 = smul.addr %s1972, 64
          %s1977 = scalar_lea.hbm %s13, %s1976
          %s1978 = sshll.u32 [#allocation21], 4
          %s1979 = int_to_ptr.vmem [resolvable:$true] %s1978
          %1984 = dma.vmem_to_hbm [thread:$0]  %s1979, 256, %s1977, [#allocation7], 64, 64, 4
        $region136: #{tpu_custom_call.1} parent=71 // pred_fallthru
          _
        // Predicated region
        $region137: #{tpu_custom_call.1} parent=71 // pred_check
          %p1985 = pneg %p390
        $region138: #{tpu_custom_call.1} parent=71 // pred_check_branch
          %1987 = sbr.rel (%p1985) target = $region140
        $region139: #{tpu_custom_call.1} parent=71 // pred_region
          %1988 = dma.done [#allocation7], 256
        $region140: #{tpu_custom_call.1} parent=71 // pred_fallthru
          _
      $region72: #{tpu_custom_call.1} parent=5 // pred_fallthru
        _
      %p1989 = scmp.le.s32.totalorder 2, %s22
      // Predicated region
      $region141: #{tpu_custom_call.1} parent=5 // pred_check
        %p1990 = pneg %p1989
      $region142: #{tpu_custom_call.1} parent=5 // pred_check_branch
        %1992 = sbr.rel (%p1990) target = $region144
      $region143: #{tpu_custom_call.1} parent=5 // pred_region
        %s1993 = ssub.s32 %s22, 2
      $region144: #{tpu_custom_call.1} parent=5 // pred_fallthru
        _
    $region6: #{tpu_custom_call.1} parent=1 // loop_footer
      %s26 = sadd.s32 1, %s22
    $region7: #{tpu_custom_call.1} parent=1 // loop_footer_branch
      %21 = sbr.rel target = $region3
    $region8: #{tpu_custom_call.1} parent=1 // loop_exit
      _
    %1994 = vsyncpa [#allocation6], 1
    %s1995 = scalar_lea.sflag [#allocation6], 1
    %1996 = vsyncpa %s1995, 1
    %1997 = vsyncpa [#allocation9], 1
    %1998 = vsyncpa [#allocation7], 1
    %s1999 = scalar_lea.sflag [#allocation7], 1
    %2000 = vsyncpa %s1999, 1

</llo_original>
